<compile_context>
chip_gen: v7x
topology: tpu7x:2x2x1
jax: 0.10.0
libtpu: 0.0.40
codegen_flags: <defaults>
</compile_context>

<pallas_src>
import functools

import jax
import jax.numpy as jnp
import numpy as np
from jax.experimental import pallas as pl
from jax.experimental.pallas import tpu as pltpu


def _round_up(x, m):
    return ((x + m - 1) // m) * m


def _mod(x, m):
    if m & (m - 1) == 0:
        return x & (m - 1)
    return jax.lax.rem(x, m)


def _div(x, m):
    if m & (m - 1) == 0:
        return x >> (m.bit_length() - 1)
    return x // m


def _pick_block_batch(n, max_b=4):
    """Largest divisor of n (<= max_b) that still leaves >= 2 grid steps, so both v7x
    TensorCores get work while per-grid-step overhead is amortized on larger batches."""
    best = 1
    for b in range(1, min(n, max_b) + 1):
        if n % b == 0 and (n // b >= 2 or n < 2):
            best = b
    return best


# ----------------------------------------------------------------------------
# Fused forward kernel (B batch elements per grid step).
# ----------------------------------------------------------------------------
def _make_weightnet_kernel(conv_cfgs, n_fc, block_b):
    n_conv = len(conv_cfgs)

    def kernel(*refs):
        it = iter(refs)
        x_ref = next(it)
        conv_w, conv_b = [], []
        for _ in range(n_conv):
            conv_w.append(next(it))
            conv_b.append(next(it))
        fc_w, fc_b = [], []
        for _ in range(n_fc):
            fc_w.append(next(it))
            fc_b.append(next(it))
        o_ref = next(it)

        act = x_ref[0].astype(jnp.float32)  # (c_in_pad0, B*hw) lane-dense, f32

        # ------------------- conv + ReLU stack (one im2col matmul per layer) -----------
        for li, cfg in enumerate(conv_cfgs):
            c_in_pad, c_out = cfg["c_in_pad"], cfg["c_out"]
            k, p, h, w, m = cfg["k"], cfg["p"], cfg["h"], cfg["w"], cfg["margin"]
            hw = h * w
            L = block_b * hw

            # Zero lane-margins keep every tap's uniform lane-shifted slice in-bounds;
            # out-of-image (and cross-sample) pixels are zeroed by the hoisted masks.
            if m > 0:
                zeros_m = jnp.zeros((c_in_pad, m), jnp.float32)
                padded = jnp.concatenate([zeros_m, act, zeros_m], axis=1)
            else:
                padded = act

            # Per-sample pixel coordinates of every output lane (hoisted, shared by taps).
            lane = jax.lax.broadcasted_iota(jnp.int32, (c_in_pad, L), 1)
            pix = _mod(lane, hw)
            ox = _mod(pix, w)
            oy = _div(pix, w)
            col_ok = []
            for dx in range(k):
                lo, hi = max(0, p - dx), (w - 1) - max(0, dx - p)
                col_ok.append(None if (lo == 0 and hi == w - 1)
                              else (ox >= lo) & (ox <= hi))
            row_ok = []
            for dy in range(k):
                lo, hi = max(0, p - dy), (h - 1) - max(0, dy - p)
                row_ok.append(None if (lo == 0 and hi == h - 1)
                              else (oy >= lo) & (oy <= hi))

            # im2col: stack the k*k masked, lane-shifted taps along sublanes.
            taps = []
            for dy in range(k):
                for dx in range(k):
                    start = m + (dy - p) * w + (dx - p)
                    src = padded[:, start:start + L]  # uniform lane shift, no relayout
                    mask = row_ok[dy]
                    if col_ok[dx] is not None:
                        mask = col_ok[dx] if mask is None else mask & col_ok[dx]
                    if mask is not None:
                        src = jnp.where(mask, src, 0.0)
                    taps.append(src)
            im2col = jnp.concatenate(taps, axis=0).astype(jnp.bfloat16)  # (k*k*c_in_pad, L)

            acc = jnp.dot(conv_w[li][...], im2col,
                          preferred_element_type=jnp.float32)            # (c_out, L) f32
            act = jnp.maximum(acc + conv_b[li][...], 0.0)

            # Sublane-pad channels for the next layer's im2col alignment.
            if li + 1 < n_conv:
                nxt_pad = conv_cfgs[li + 1]["c_in_pad"]
                if c_out < nxt_pad:
                    act = jnp.concatenate(
                        [act, jnp.zeros((nxt_pad - c_out, L), jnp.float32)], axis=0)

        # ------------------- fused FC stack (M = block_b) -------------------
        c_last, L = act.shape
        hw = L // block_b
        # NCHW flatten = lane-concatenation of the per-channel (B, hw) blocks.
        if block_b == 1:
            pieces = [act[c:c + 1, :] for c in range(c_last)]
        else:
            a3 = act.reshape(c_last, block_b, hw)
            pieces = [a3[c] for c in range(c_last)]
        y = jnp.concatenate(pieces, axis=1).astype(jnp.bfloat16)  # (B, c_last*hw)

        out = None
        for fi in range(n_fc):
            out = jnp.dot(y, fc_w[fi][...],
                          preferred_element_type=jnp.float32) + fc_b[fi][...]
            if fi != n_fc - 1:
                out = jnp.maximum(out, 0.0)
                y = out.astype(jnp.bfloat16)

        o_ref[0] = out.astype(o_ref.dtype)  # (B, out_pad) lane-dense store

    return kernel


# ----------------------------------------------------------------------------
# Wrapper: one-time parameter re-layouts/casts + a single pallas_call.
# ----------------------------------------------------------------------------
def weightnet_forward(x, conv_params, fc_params, padding_list, block_batch=None):
    """x: (N, C0, H, W); conv w: (C_out, C_in, k, k), b: (C_out,);
    fc w: (D_in, D_out) (= PyTorch weight transposed), b: (D_out,)."""
    n, c0, h, w = x.shape
    n_conv = len(conv_params)
    n_fc = len(fc_params)
    assert n_fc >= 1

    B = _pick_block_batch(n) if block_batch is None else block_batch
    assert n % B == 0
    nb = n // B
    hw = h * w
    L = B * hw

    # ---- conv configs -----------------------------------------------------------------
    conv_cfgs = []
    ch, hh, ww = c0, h, w
    for (cw, _), p in zip(conv_params, padding_list):
        c_out, c_in, kh, kw = cw.shape
        assert kh == kw and c_in == ch
        k = kh
        ho, wo = hh + 2 * p - k + 1, ww + 2 * p - k + 1
        # TODO(synk): the flat-offset im2col assumes 'same', stride-1 convolutions
        # (2*p == k-1); other padding/stride configs would need a padded-frame layout.
        assert ho == hh and wo == ww, "fused kernel requires 'same' convolutions"
        c_in_pad = _round_up(c_in, 8)
        margin = _round_up(p * ww + p, 128)
        conv_cfgs.append(dict(c_in=c_in, c_in_pad=c_in_pad, c_out=c_out,
                              k=k, p=p, h=hh, w=ww, margin=margin))
        ch, hh, ww = c_out, ho, wo

    c_last = ch
    assert fc_params[0][0].shape[0] == c_last * hw
    d_out_true = [fw.shape[1] for fw, _ in fc_params]
    d_out_pad = [_round_up(d, 128) for d in d_out_true]
    n_classes = d_out_true[-1]
    out_pad = d_out_pad[-1]

    kernel_inputs, in_specs = [], []

    # x: (nb, c_in_pad0, B*hw), samples lane-concatenated inside each block.
    c_in_pad0 = conv_cfgs[0]["c_in_pad"] if n_conv else c0
    xb = x.reshape(nb, B, c0, hw).transpose(0, 2, 1, 3).reshape(nb, c0, L)
    if c_in_pad0 > c0:
        xb = jnp.pad(xb, ((0, 0), (0, c_in_pad0 - c0), (0, 0)))
    kernel_inputs.append(xb.astype(jnp.float32))
    in_specs.append(pl.BlockSpec((1, c_in_pad0, L), lambda i: (i, 0, 0)))

    # conv weights as (c_out, k*k*c_in_pad) bf16 (im2col order: (dy, dx, c_in)).
    for (cw, cb), cfg in zip(conv_params, conv_cfgs):
        k, c_out, c_in, c_in_pad = cfg["k"], cfg["c_out"], cfg["c_in"], cfg["c_in_pad"]
        w_im = jnp.transpose(cw, (0, 2, 3, 1))                   # (c_out, k, k, c_in)
        if c_in_pad > c_in:
            w_im = jnp.pad(w_im, ((0, 0), (0, 0), (0, 0), (0, c_in_pad - c_in)))
        w_im = w_im.reshape(c_out, k * k * c_in_pad).astype(jnp.bfloat16)
        kernel_inputs.append(w_im)
        in_specs.append(pl.BlockSpec((c_out, k * k * c_in_pad), lambda i: (0, 0)))
        kernel_inputs.append(cb.reshape(c_out, 1).astype(jnp.float32))
        in_specs.append(pl.BlockSpec((c_out, 1), lambda i: (0, 0)))

    # fc weights: zero-pad hidden/output dims to multiples of 128 (lane-dense), bf16.
    d_prev = c_last * hw
    for fi, (fw, fb) in enumerate(fc_params):
        d_in, d_out = fw.shape
        dpad = d_out_pad[fi]
        w_p = jnp.pad(fw, ((0, d_prev - d_in), (0, dpad - d_out))).astype(jnp.bfloat16)
        kernel_inputs.append(w_p)
        in_specs.append(pl.BlockSpec((d_prev, dpad), lambda i: (0, 0)))
        b_p = jnp.pad(fb, (0, dpad - d_out)).reshape(1, dpad).astype(jnp.float32)
        kernel_inputs.append(b_p)
        in_specs.append(pl.BlockSpec((1, dpad), lambda i: (0, 0)))
        d_prev = dpad

    kernel = _make_weightnet_kernel(conv_cfgs, n_fc, B)
    out = pl.pallas_call(
        kernel,
        out_shape=jax.ShapeDtypeStruct((nb, B, out_pad), jnp.float32),
        grid=(nb,),
        in_specs=in_specs,
        out_specs=pl.BlockSpec((1, B, out_pad), lambda i: (i, 0, 0)),
        compiler_params=pltpu.CompilerParams(dimension_semantics=("parallel",)),
    )(*kernel_inputs)
    return out.reshape(n, out_pad)[:, :n_classes]


# ----------------------------------------------------------------------------
# Parameter init (PyTorch default init ranges; fc weights stored transposed).
# ----------------------------------------------------------------------------
def init_params(key, channels_list, conv_size_list, fc_dim_list):
    conv_params, fc_params = [], []
    for i in range(len(channels_list) - 1):
        key, kw_, kb_ = jax.random.split(key, 3)
        c_in, c_out, k = channels_list[i], channels_list[i + 1], conv_size_list[i]
        scale = 1.0 / jnp.sqrt(c_in * k * k)
        wt = jax.random.uniform(kw_, (c_out, c_in, k, k), jnp.float32, -scale, scale)
        bs = jax.random.uniform(kb_, (c_out,), jnp.float32, -scale, scale)
        conv_params.append((wt, bs))
    for i in range(len(fc_dim_list) - 1):
        key, kw_, kb_ = jax.random.split(key, 3)
        d_in, d_out = fc_dim_list[i], fc_dim_list[i + 1]
        scale = 1.0 / jnp.sqrt(d_in)
        wt = jax.random.uniform(kw_, (d_in, d_out), jnp.float32, -scale, scale)
        bs = jax.random.uniform(kb_, (d_out,), jnp.float32, -scale, scale)
        fc_params.append((wt, bs))
    return conv_params, fc_params


# Pure-JAX reference (independent code path) for the numerical sanity check.
def _reference_forward(x, conv_params, fc_params, padding_list):
    y = x
    for (cw, cb), p in zip(conv_params, padding_list):
        y = jax.lax.conv_general_dilated(
            y, cw, window_strides=(1, 1), padding=[(p, p), (p, p)],
            dimension_numbers=("NCHW", "OIHW", "NCHW"),
            precision=jax.lax.Precision.HIGHEST)
        y = jnp.maximum(y + cb.reshape(1, -1, 1, 1), 0.0)
    y = y.reshape(y.shape[0], -1)
    for i, (fw, fb) in enumerate(fc_params):
        y = jnp.dot(y, fw, precision=jax.lax.Precision.HIGHEST) + fb
        if i != len(fc_params) - 1:
            y = jnp.maximum(y, 0.0)
    return y


if __name__ == "__main__":
    # Config consistent with the module's forward:
    #   x: (N=2, C=4, H=16, W=16); conv 4->8->8, 3x3, padding 1; fc 2048 -> 32 -> 10.
    channels_list = [4, 8, 8]
    conv_size_list = [3, 3]
    padding_list = [1, 1]
    fc_dim_list = [8 * 16 * 16, 32, 10]

    key = jax.random.PRNGKey(0)
    key, kx = jax.random.split(key)
    x = jax.random.normal(kx, (2, 4, 16, 16), dtype=jnp.float32)
    conv_params, fc_params = init_params(key, channels_list, conv_size_list, fc_dim_list)

    fwd = jax.jit(functools.partial(weightnet_forward, padding_list=padding_list))
    out = fwd(x, conv_params, fc_params)
    jax.block_until_ready(out)
    assert out.shape == (2, fc_dim_list[-1]), out.shape

    # bf16 MXU operands (f32 accumulation) vs. a HIGHEST-precision f32 reference:
    # tolerances relaxed per the review's accuracy note.
    ref = _reference_forward(x, conv_params, fc_params, padding_list)
    np.testing.assert_allclose(np.asarray(out), np.asarray(ref), rtol=5e-2, atol=1e-2)

    print("KERNEL_OK")
</pallas_src>

<mosaic_0001>
module attributes {stable_mosaic.version = 11 : i64} {
  func.func @kernel(%arg0: i32, %arg1: memref<1x8x256xf32, #tpu.memory_space<vmem>>, %arg2: memref<8x72xbf16, #tpu.memory_space<vmem>>, %arg3: memref<8x1xf32, #tpu.memory_space<vmem>>, %arg4: memref<8x72xbf16, #tpu.memory_space<vmem>>, %arg5: memref<8x1xf32, #tpu.memory_space<vmem>>, %arg6: memref<2048x128xbf16, #tpu.memory_space<vmem>>, %arg7: memref<1x128xf32, #tpu.memory_space<vmem>>, %arg8: memref<128x128xbf16, #tpu.memory_space<vmem>>, %arg9: memref<1x128xf32, #tpu.memory_space<vmem>>, %arg10: memref<1x1x128xf32, #tpu.memory_space<vmem>>) attributes {dimension_semantics = [#tpu.dimension_semantics<parallel>], iteration_bounds = array<i64: 2>, scalar_prefetch = 0 : i64, scratch_operands = 0 : i64, tpu.core_type = #tpu.core_type<tc>, window_params = [{transform_indices = @transform_0, window_bounds = array<i64: 1, 8, 256>}, {pipeline_mode = #tpu.pipeline_mode<synchronous>, transform_indices = @transform_1, window_bounds = array<i64: 8, 72>}, {pipeline_mode = #tpu.pipeline_mode<synchronous>, transform_indices = @transform_2, window_bounds = array<i64: 8, 1>}, {pipeline_mode = #tpu.pipeline_mode<synchronous>, transform_indices = @transform_3, window_bounds = array<i64: 8, 72>}, {pipeline_mode = #tpu.pipeline_mode<synchronous>, transform_indices = @transform_4, window_bounds = array<i64: 8, 1>}, {pipeline_mode = #tpu.pipeline_mode<synchronous>, transform_indices = @transform_5, window_bounds = array<i64: 2048, 128>}, {pipeline_mode = #tpu.pipeline_mode<synchronous>, transform_indices = @transform_6, window_bounds = array<i64: 1, 128>}, {pipeline_mode = #tpu.pipeline_mode<synchronous>, transform_indices = @transform_7, window_bounds = array<i64: 128, 128>}, {pipeline_mode = #tpu.pipeline_mode<synchronous>, transform_indices = @transform_8, window_bounds = array<i64: 1, 128>}, {transform_indices = @transform_9, window_bounds = array<i64: 1, 1, 128>}]} {
    %c0 = arith.constant 0 : index
    %c0_0 = arith.constant 0 : index
    %c0_1 = arith.constant 0 : index
    %0 = vector.load %arg1[%c0, %c0_0, %c0_1] : memref<1x8x256xf32, #tpu.memory_space<vmem>>, vector<1x8x256xf32>
    %1 = vector.shape_cast %0 : vector<1x8x256xf32> to vector<8x256xf32>
    %cst = arith.constant 0.000000e+00 : f32
    %2 = vector.broadcast %cst : f32 to vector<8x128xf32>
    %3 = tpu.concatenate %2, %1, %2 in 1 : vector<8x128xf32>, vector<8x256xf32>, vector<8x128xf32> -> vector<8x512xf32>
    %4 = tpu.iota {dimensions = array<i32: 1>} : vector<8x256xi32>
    %c255_i32 = arith.constant 255 : i32
    %5 = vector.broadcast %c255_i32 : i32 to vector<8x256xi32>
    %6 = arith.andi %4, %5 : vector<8x256xi32>
    %c15_i32 = arith.constant 15 : i32
    %7 = vector.broadcast %c15_i32 : i32 to vector<8x256xi32>
    %8 = arith.andi %6, %7 : vector<8x256xi32>
    %c4_i32 = arith.constant 4 : i32
    %9 = vector.broadcast %c4_i32 : i32 to vector<8x256xi32>
    %10 = arith.shrsi %6, %9 : vector<8x256xi32>
    %c1_i32 = arith.constant 1 : i32
    %11 = vector.broadcast %c1_i32 : i32 to vector<8x256xi32>
    %12 = arith.cmpi sge, %8, %11 : vector<8x256xi32>
    %c15_i32_2 = arith.constant 15 : i32
    %13 = vector.broadcast %c15_i32_2 : i32 to vector<8x256xi32>
    %14 = arith.cmpi sle, %8, %13 : vector<8x256xi32>
    %15 = arith.andi %12, %14 : vector<8x256xi1>
    %c0_i32 = arith.constant 0 : i32
    %16 = vector.broadcast %c0_i32 : i32 to vector<8x256xi32>
    %17 = arith.cmpi sge, %8, %16 : vector<8x256xi32>
    %c14_i32 = arith.constant 14 : i32
    %18 = vector.broadcast %c14_i32 : i32 to vector<8x256xi32>
    %19 = arith.cmpi sle, %8, %18 : vector<8x256xi32>
    %20 = arith.andi %17, %19 : vector<8x256xi1>
    %c1_i32_3 = arith.constant 1 : i32
    %21 = vector.broadcast %c1_i32_3 : i32 to vector<8x256xi32>
    %22 = arith.cmpi sge, %10, %21 : vector<8x256xi32>
    %c15_i32_4 = arith.constant 15 : i32
    %23 = vector.broadcast %c15_i32_4 : i32 to vector<8x256xi32>
    %24 = arith.cmpi sle, %10, %23 : vector<8x256xi32>
    %25 = arith.andi %22, %24 : vector<8x256xi1>
    %c0_i32_5 = arith.constant 0 : i32
    %26 = vector.broadcast %c0_i32_5 : i32 to vector<8x256xi32>
    %27 = arith.cmpi sge, %10, %26 : vector<8x256xi32>
    %c14_i32_6 = arith.constant 14 : i32
    %28 = vector.broadcast %c14_i32_6 : i32 to vector<8x256xi32>
    %29 = arith.cmpi sle, %10, %28 : vector<8x256xi32>
    %30 = arith.andi %27, %29 : vector<8x256xi1>
    %31 = vector.extract_strided_slice %3 {offsets = [0, 111], sizes = [8, 256], strides = [1, 1]} : vector<8x512xf32> to vector<8x256xf32>
    %32 = arith.andi %25, %15 : vector<8x256xi1>
    %cst_7 = arith.constant 0.000000e+00 : f32
    %33 = vector.broadcast %cst_7 : f32 to vector<8x256xf32>
    %34 = arith.select %32, %31, %33 : vector<8x256xi1>, vector<8x256xf32>
    %35 = vector.extract_strided_slice %3 {offsets = [0, 112], sizes = [8, 256], strides = [1, 1]} : vector<8x512xf32> to vector<8x256xf32>
    %cst_8 = arith.constant 0.000000e+00 : f32
    %36 = vector.broadcast %cst_8 : f32 to vector<8x256xf32>
    %37 = arith.select %25, %35, %36 : vector<8x256xi1>, vector<8x256xf32>
    %38 = vector.extract_strided_slice %3 {offsets = [0, 113], sizes = [8, 256], strides = [1, 1]} : vector<8x512xf32> to vector<8x256xf32>
    %39 = arith.andi %25, %20 : vector<8x256xi1>
    %cst_9 = arith.constant 0.000000e+00 : f32
    %40 = vector.broadcast %cst_9 : f32 to vector<8x256xf32>
    %41 = arith.select %39, %38, %40 : vector<8x256xi1>, vector<8x256xf32>
    %42 = vector.extract_strided_slice %3 {offsets = [0, 127], sizes = [8, 256], strides = [1, 1]} : vector<8x512xf32> to vector<8x256xf32>
    %cst_10 = arith.constant 0.000000e+00 : f32
    %43 = vector.broadcast %cst_10 : f32 to vector<8x256xf32>
    %44 = arith.select %15, %42, %43 : vector<8x256xi1>, vector<8x256xf32>
    %45 = vector.extract_strided_slice %3 {offsets = [0, 128], sizes = [8, 256], strides = [1, 1]} : vector<8x512xf32> to vector<8x256xf32>
    %46 = vector.extract_strided_slice %3 {offsets = [0, 129], sizes = [8, 256], strides = [1, 1]} : vector<8x512xf32> to vector<8x256xf32>
    %cst_11 = arith.constant 0.000000e+00 : f32
    %47 = vector.broadcast %cst_11 : f32 to vector<8x256xf32>
    %48 = arith.select %20, %46, %47 : vector<8x256xi1>, vector<8x256xf32>
    %49 = vector.extract_strided_slice %3 {offsets = [0, 143], sizes = [8, 256], strides = [1, 1]} : vector<8x512xf32> to vector<8x256xf32>
    %50 = arith.andi %30, %15 : vector<8x256xi1>
    %cst_12 = arith.constant 0.000000e+00 : f32
    %51 = vector.broadcast %cst_12 : f32 to vector<8x256xf32>
    %52 = arith.select %50, %49, %51 : vector<8x256xi1>, vector<8x256xf32>
    %53 = vector.extract_strided_slice %3 {offsets = [0, 144], sizes = [8, 256], strides = [1, 1]} : vector<8x512xf32> to vector<8x256xf32>
    %cst_13 = arith.constant 0.000000e+00 : f32
    %54 = vector.broadcast %cst_13 : f32 to vector<8x256xf32>
    %55 = arith.select %30, %53, %54 : vector<8x256xi1>, vector<8x256xf32>
    %56 = vector.extract_strided_slice %3 {offsets = [0, 145], sizes = [8, 256], strides = [1, 1]} : vector<8x512xf32> to vector<8x256xf32>
    %57 = arith.andi %30, %20 : vector<8x256xi1>
    %cst_14 = arith.constant 0.000000e+00 : f32
    %58 = vector.broadcast %cst_14 : f32 to vector<8x256xf32>
    %59 = arith.select %57, %56, %58 : vector<8x256xi1>, vector<8x256xf32>
    %60 = tpu.concatenate %34, %37, %41, %44, %45, %48, %52, %55, %59 in 0 : vector<8x256xf32>, vector<8x256xf32>, vector<8x256xf32>, vector<8x256xf32>, vector<8x256xf32>, vector<8x256xf32>, vector<8x256xf32>, vector<8x256xf32>, vector<8x256xf32> -> vector<72x256xf32>
    %61 = arith.truncf %60 : vector<72x256xf32> to vector<72x256xbf16>
    %c0_15 = arith.constant 0 : index
    %c0_16 = arith.constant 0 : index
    %62 = vector.load %arg2[%c0_15, %c0_16] : memref<8x72xbf16, #tpu.memory_space<vmem>>, vector<8x72xbf16>
    %cst_17 = arith.constant dense<0.000000e+00> : vector<8x256xf32>
    %63 = tpu.matmul %62, %61, %cst_17 {dimension_numbers = #tpu.dot_dimension_numbers<[1], [0], [0], [1], [0, 0, 1, 1], [], []>} : vector<8x72xbf16>, vector<72x256xbf16>, vector<8x256xf32> -> vector<8x256xf32>
    %c0_18 = arith.constant 0 : index
    %c0_19 = arith.constant 0 : index
    %64 = vector.load %arg3[%c0_18, %c0_19] : memref<8x1xf32, #tpu.memory_space<vmem>>, vector<8x1xf32>
    %65 = vector.broadcast %64 : vector<8x1xf32> to vector<8x256xf32>
    %66 = arith.addf %63, %65 : vector<8x256xf32>
    %cst_20 = arith.constant 0.000000e+00 : f32
    %67 = vector.broadcast %cst_20 : f32 to vector<8x256xf32>
    %68 = arith.maximumf %66, %67 : vector<8x256xf32>
    %cst_21 = arith.constant 0.000000e+00 : f32
    %69 = vector.broadcast %cst_21 : f32 to vector<8x128xf32>
    %70 = tpu.concatenate %69, %68, %69 in 1 : vector<8x128xf32>, vector<8x256xf32>, vector<8x128xf32> -> vector<8x512xf32>
    %71 = tpu.iota {dimensions = array<i32: 1>} : vector<8x256xi32>
    %c255_i32_22 = arith.constant 255 : i32
    %72 = vector.broadcast %c255_i32_22 : i32 to vector<8x256xi32>
    %73 = arith.andi %71, %72 : vector<8x256xi32>
    %c15_i32_23 = arith.constant 15 : i32
    %74 = vector.broadcast %c15_i32_23 : i32 to vector<8x256xi32>
    %75 = arith.andi %73, %74 : vector<8x256xi32>
    %c4_i32_24 = arith.constant 4 : i32
    %76 = vector.broadcast %c4_i32_24 : i32 to vector<8x256xi32>
    %77 = arith.shrsi %73, %76 : vector<8x256xi32>
    %c1_i32_25 = arith.constant 1 : i32
    %78 = vector.broadcast %c1_i32_25 : i32 to vector<8x256xi32>
    %79 = arith.cmpi sge, %75, %78 : vector<8x256xi32>
    %c15_i32_26 = arith.constant 15 : i32
    %80 = vector.broadcast %c15_i32_26 : i32 to vector<8x256xi32>
    %81 = arith.cmpi sle, %75, %80 : vector<8x256xi32>
    %82 = arith.andi %79, %81 : vector<8x256xi1>
    %c0_i32_27 = arith.constant 0 : i32
    %83 = vector.broadcast %c0_i32_27 : i32 to vector<8x256xi32>
    %84 = arith.cmpi sge, %75, %83 : vector<8x256xi32>
    %c14_i32_28 = arith.constant 14 : i32
    %85 = vector.broadcast %c14_i32_28 : i32 to vector<8x256xi32>
    %86 = arith.cmpi sle, %75, %85 : vector<8x256xi32>
    %87 = arith.andi %84, %86 : vector<8x256xi1>
    %c1_i32_29 = arith.constant 1 : i32
    %88 = vector.broadcast %c1_i32_29 : i32 to vector<8x256xi32>
    %89 = arith.cmpi sge, %77, %88 : vector<8x256xi32>
    %c15_i32_30 = arith.constant 15 : i32
    %90 = vector.broadcast %c15_i32_30 : i32 to vector<8x256xi32>
    %91 = arith.cmpi sle, %77, %90 : vector<8x256xi32>
    %92 = arith.andi %89, %91 : vector<8x256xi1>
    %c0_i32_31 = arith.constant 0 : i32
    %93 = vector.broadcast %c0_i32_31 : i32 to vector<8x256xi32>
    %94 = arith.cmpi sge, %77, %93 : vector<8x256xi32>
    %c14_i32_32 = arith.constant 14 : i32
    %95 = vector.broadcast %c14_i32_32 : i32 to vector<8x256xi32>
    %96 = arith.cmpi sle, %77, %95 : vector<8x256xi32>
    %97 = arith.andi %94, %96 : vector<8x256xi1>
    %98 = vector.extract_strided_slice %70 {offsets = [0, 111], sizes = [8, 256], strides = [1, 1]} : vector<8x512xf32> to vector<8x256xf32>
    %99 = arith.andi %92, %82 : vector<8x256xi1>
    %cst_33 = arith.constant 0.000000e+00 : f32
    %100 = vector.broadcast %cst_33 : f32 to vector<8x256xf32>
    %101 = arith.select %99, %98, %100 : vector<8x256xi1>, vector<8x256xf32>
    %102 = vector.extract_strided_slice %70 {offsets = [0, 112], sizes = [8, 256], strides = [1, 1]} : vector<8x512xf32> to vector<8x256xf32>
    %cst_34 = arith.constant 0.000000e+00 : f32
    %103 = vector.broadcast %cst_34 : f32 to vector<8x256xf32>
    %104 = arith.select %92, %102, %103 : vector<8x256xi1>, vector<8x256xf32>
    %105 = vector.extract_strided_slice %70 {offsets = [0, 113], sizes = [8, 256], strides = [1, 1]} : vector<8x512xf32> to vector<8x256xf32>
    %106 = arith.andi %92, %87 : vector<8x256xi1>
    %cst_35 = arith.constant 0.000000e+00 : f32
    %107 = vector.broadcast %cst_35 : f32 to vector<8x256xf32>
    %108 = arith.select %106, %105, %107 : vector<8x256xi1>, vector<8x256xf32>
    %109 = vector.extract_strided_slice %70 {offsets = [0, 127], sizes = [8, 256], strides = [1, 1]} : vector<8x512xf32> to vector<8x256xf32>
    %cst_36 = arith.constant 0.000000e+00 : f32
    %110 = vector.broadcast %cst_36 : f32 to vector<8x256xf32>
    %111 = arith.select %82, %109, %110 : vector<8x256xi1>, vector<8x256xf32>
    %112 = vector.extract_strided_slice %70 {offsets = [0, 128], sizes = [8, 256], strides = [1, 1]} : vector<8x512xf32> to vector<8x256xf32>
    %113 = vector.extract_strided_slice %70 {offsets = [0, 129], sizes = [8, 256], strides = [1, 1]} : vector<8x512xf32> to vector<8x256xf32>
    %cst_37 = arith.constant 0.000000e+00 : f32
    %114 = vector.broadcast %cst_37 : f32 to vector<8x256xf32>
    %115 = arith.select %87, %113, %114 : vector<8x256xi1>, vector<8x256xf32>
    %116 = vector.extract_strided_slice %70 {offsets = [0, 143], sizes = [8, 256], strides = [1, 1]} : vector<8x512xf32> to vector<8x256xf32>
    %117 = arith.andi %97, %82 : vector<8x256xi1>
    %cst_38 = arith.constant 0.000000e+00 : f32
    %118 = vector.broadcast %cst_38 : f32 to vector<8x256xf32>
    %119 = arith.select %117, %116, %118 : vector<8x256xi1>, vector<8x256xf32>
    %120 = vector.extract_strided_slice %70 {offsets = [0, 144], sizes = [8, 256], strides = [1, 1]} : vector<8x512xf32> to vector<8x256xf32>
    %cst_39 = arith.constant 0.000000e+00 : f32
    %121 = vector.broadcast %cst_39 : f32 to vector<8x256xf32>
    %122 = arith.select %97, %120, %121 : vector<8x256xi1>, vector<8x256xf32>
    %123 = vector.extract_strided_slice %70 {offsets = [0, 145], sizes = [8, 256], strides = [1, 1]} : vector<8x512xf32> to vector<8x256xf32>
    %124 = arith.andi %97, %87 : vector<8x256xi1>
    %cst_40 = arith.constant 0.000000e+00 : f32
    %125 = vector.broadcast %cst_40 : f32 to vector<8x256xf32>
    %126 = arith.select %124, %123, %125 : vector<8x256xi1>, vector<8x256xf32>
    %127 = tpu.concatenate %101, %104, %108, %111, %112, %115, %119, %122, %126 in 0 : vector<8x256xf32>, vector<8x256xf32>, vector<8x256xf32>, vector<8x256xf32>, vector<8x256xf32>, vector<8x256xf32>, vector<8x256xf32>, vector<8x256xf32>, vector<8x256xf32> -> vector<72x256xf32>
    %128 = arith.truncf %127 : vector<72x256xf32> to vector<72x256xbf16>
    %c0_41 = arith.constant 0 : index
    %c0_42 = arith.constant 0 : index
    %129 = vector.load %arg4[%c0_41, %c0_42] : memref<8x72xbf16, #tpu.memory_space<vmem>>, vector<8x72xbf16>
    %cst_43 = arith.constant dense<0.000000e+00> : vector<8x256xf32>
    %130 = tpu.matmul %129, %128, %cst_43 {dimension_numbers = #tpu.dot_dimension_numbers<[1], [0], [0], [1], [0, 0, 1, 1], [], []>} : vector<8x72xbf16>, vector<72x256xbf16>, vector<8x256xf32> -> vector<8x256xf32>
    %c0_44 = arith.constant 0 : index
    %c0_45 = arith.constant 0 : index
    %131 = vector.load %arg5[%c0_44, %c0_45] : memref<8x1xf32, #tpu.memory_space<vmem>>, vector<8x1xf32>
    %132 = vector.broadcast %131 : vector<8x1xf32> to vector<8x256xf32>
    %133 = arith.addf %130, %132 : vector<8x256xf32>
    %cst_46 = arith.constant 0.000000e+00 : f32
    %134 = vector.broadcast %cst_46 : f32 to vector<8x256xf32>
    %135 = arith.maximumf %133, %134 : vector<8x256xf32>
    %136 = vector.extract_strided_slice %135 {offsets = [0, 0], sizes = [1, 256], strides = [1, 1]} : vector<8x256xf32> to vector<1x256xf32>
    %137 = vector.extract_strided_slice %135 {offsets = [1, 0], sizes = [1, 256], strides = [1, 1]} : vector<8x256xf32> to vector<1x256xf32>
    %138 = vector.extract_strided_slice %135 {offsets = [2, 0], sizes = [1, 256], strides = [1, 1]} : vector<8x256xf32> to vector<1x256xf32>
    %139 = vector.extract_strided_slice %135 {offsets = [3, 0], sizes = [1, 256], strides = [1, 1]} : vector<8x256xf32> to vector<1x256xf32>
    %140 = vector.extract_strided_slice %135 {offsets = [4, 0], sizes = [1, 256], strides = [1, 1]} : vector<8x256xf32> to vector<1x256xf32>
    %141 = vector.extract_strided_slice %135 {offsets = [5, 0], sizes = [1, 256], strides = [1, 1]} : vector<8x256xf32> to vector<1x256xf32>
    %142 = vector.extract_strided_slice %135 {offsets = [6, 0], sizes = [1, 256], strides = [1, 1]} : vector<8x256xf32> to vector<1x256xf32>
    %143 = vector.extract_strided_slice %135 {offsets = [7, 0], sizes = [1, 256], strides = [1, 1]} : vector<8x256xf32> to vector<1x256xf32>
    %144 = tpu.concatenate %136, %137, %138, %139, %140, %141, %142, %143 in 1 : vector<1x256xf32>, vector<1x256xf32>, vector<1x256xf32>, vector<1x256xf32>, vector<1x256xf32>, vector<1x256xf32>, vector<1x256xf32>, vector<1x256xf32> -> vector<1x2048xf32>
    %145 = arith.truncf %144 : vector<1x2048xf32> to vector<1x2048xbf16>
    %c0_47 = arith.constant 0 : index
    %c0_48 = arith.constant 0 : index
    %146 = vector.load %arg6[%c0_47, %c0_48] : memref<2048x128xbf16, #tpu.memory_space<vmem>>, vector<2048x128xbf16>
    %cst_49 = arith.constant dense<0.000000e+00> : vector<1x128xf32>
    %147 = tpu.matmul %145, %146, %cst_49 {dimension_numbers = #tpu.dot_dimension_numbers<[1], [0], [0], [1], [0, 0, 1, 1], [], []>} : vector<1x2048xbf16>, vector<2048x128xbf16>, vector<1x128xf32> -> vector<1x128xf32>
    %c0_50 = arith.constant 0 : index
    %c0_51 = arith.constant 0 : index
    %148 = vector.load %arg7[%c0_50, %c0_51] : memref<1x128xf32, #tpu.memory_space<vmem>>, vector<1x128xf32>
    %149 = arith.addf %147, %148 : vector<1x128xf32>
    %cst_52 = arith.constant 0.000000e+00 : f32
    %150 = vector.broadcast %cst_52 : f32 to vector<1x128xf32>
    %151 = arith.maximumf %149, %150 : vector<1x128xf32>
    %152 = arith.truncf %151 : vector<1x128xf32> to vector<1x128xbf16>
    %c0_53 = arith.constant 0 : index
    %c0_54 = arith.constant 0 : index
    %153 = vector.load %arg8[%c0_53, %c0_54] : memref<128x128xbf16, #tpu.memory_space<vmem>>, vector<128x128xbf16>
    %cst_55 = arith.constant dense<0.000000e+00> : vector<1x128xf32>
    %154 = tpu.matmul %152, %153, %cst_55 {dimension_numbers = #tpu.dot_dimension_numbers<[1], [0], [0], [1], [0, 0, 1, 1], [], []>} : vector<1x128xbf16>, vector<128x128xbf16>, vector<1x128xf32> -> vector<1x128xf32>
    %c0_56 = arith.constant 0 : index
    %c0_57 = arith.constant 0 : index
    %155 = vector.load %arg9[%c0_56, %c0_57] : memref<1x128xf32, #tpu.memory_space<vmem>>, vector<1x128xf32>
    %156 = arith.addf %154, %155 : vector<1x128xf32>
    %c0_58 = arith.constant 0 : index
    %c0_59 = arith.constant 0 : index
    %c0_60 = arith.constant 0 : index
    %157 = vector.load %arg10[%c0_58, %c0_59, %c0_60] : memref<1x1x128xf32, #tpu.memory_space<vmem>>, vector<1x1x128xf32>
    %158 = vector.shape_cast %157 : vector<1x1x128xf32> to vector<1x128xf32>
    %159 = vector.shape_cast %156 : vector<1x128xf32> to vector<1x1x128xf32>
    tpu.vector_store %arg10[%c0_58, %c0_59, %c0_60], %159 {strides = array<i32>} : memref<1x1x128xf32, #tpu.memory_space<vmem>>, vector<1x1x128xf32>,
    return
  }
  func.func @transform_0(%arg0: i32) -> (i32, i32, i32) {
    %c0_i32 = arith.constant 0 : i32
    %c0_i32_0 = arith.constant 0 : i32
    %c0_i32_1 = arith.constant 0 : i32
    return %arg0, %c0_i32, %c0_i32_0 : i32, i32, i32
  }
  func.func @transform_1(%arg0: i32) -> (i32, i32) {
    %c0_i32 = arith.constant 0 : i32
    %c0_i32_0 = arith.constant 0 : i32
    %c0_i32_1 = arith.constant 0 : i32
    return %c0_i32, %c0_i32_0 : i32, i32
  }
  func.func @transform_2(%arg0: i32) -> (i32, i32) {
    %c0_i32 = arith.constant 0 : i32
    %c0_i32_0 = arith.constant 0 : i32
    %c0_i32_1 = arith.constant 0 : i32
    return %c0_i32, %c0_i32_0 : i32, i32
  }
  func.func @transform_3(%arg0: i32) -> (i32, i32) {
    %c0_i32 = arith.constant 0 : i32
    %c0_i32_0 = arith.constant 0 : i32
    %c0_i32_1 = arith.constant 0 : i32
    return %c0_i32, %c0_i32_0 : i32, i32
  }
  func.func @transform_4(%arg0: i32) -> (i32, i32) {
    %c0_i32 = arith.constant 0 : i32
    %c0_i32_0 = arith.constant 0 : i32
    %c0_i32_1 = arith.constant 0 : i32
    return %c0_i32, %c0_i32_0 : i32, i32
  }
  func.func @transform_5(%arg0: i32) -> (i32, i32) {
    %c0_i32 = arith.constant 0 : i32
    %c0_i32_0 = arith.constant 0 : i32
    %c0_i32_1 = arith.constant 0 : i32
    return %c0_i32, %c0_i32_0 : i32, i32
  }
  func.func @transform_6(%arg0: i32) -> (i32, i32) {
    %c0_i32 = arith.constant 0 : i32
    %c0_i32_0 = arith.constant 0 : i32
    %c0_i32_1 = arith.constant 0 : i32
    return %c0_i32, %c0_i32_0 : i32, i32
  }
  func.func @transform_7(%arg0: i32) -> (i32, i32) {
    %c0_i32 = arith.constant 0 : i32
    %c0_i32_0 = arith.constant 0 : i32
    %c0_i32_1 = arith.constant 0 : i32
    return %c0_i32, %c0_i32_0 : i32, i32
  }
  func.func @transform_8(%arg0: i32) -> (i32, i32) {
    %c0_i32 = arith.constant 0 : i32
    %c0_i32_0 = arith.constant 0 : i32
    %c0_i32_1 = arith.constant 0 : i32
    return %c0_i32, %c0_i32_0 : i32, i32
  }
  func.func @transform_9(%arg0: i32) -> (i32, i32, i32) {
    %c0_i32 = arith.constant 0 : i32
    %c0_i32_0 = arith.constant 0 : i32
    %c0_i32_1 = arith.constant 0 : i32
    return %arg0, %c0_i32, %c0_i32_0 : i32, i32, i32
  }
}

</mosaic_0001>

<llo_original>
// kernel: weightnet_forward.1
$region0: #{weightnet_forward.1}
  #allocation0 [shape = 'u32[]', space=smem, size = 0x4, offset = 0x4, fixed_abs, tag = 'smem constant byte address 0x4 - core index']
  #allocation1 [shape = 'u32[144,128]{1,0:T(1,128)}', space=vmem, size = 0x12000, scoped, tag = 'internal scratch']
  %s0 = inlined_call_operand.vmem [shape: f32[2,8,256], index: 0, kind: input, shape index: {}]
  %s1 = inlined_call_operand.vmem [shape: bf16[8,72], index: 1, kind: input, shape index: {}]
  %s2 = inlined_call_operand.vmem [shape: f32[8,1], index: 2, kind: input, shape index: {}]
  %s3 = inlined_call_operand.vmem [shape: bf16[8,72], index: 3, kind: input, shape index: {}]
  %s4 = inlined_call_operand.vmem [shape: f32[8,1], index: 4, kind: input, shape index: {}]
  %s5 = inlined_call_operand.vmem [shape: bf16[2048,128], index: 5, kind: input, shape index: {}]
  %s6 = inlined_call_operand.vmem [shape: f32[1,128], index: 6, kind: input, shape index: {}]
  %s7 = inlined_call_operand.vmem [shape: bf16[128,128], index: 7, kind: input, shape index: {}]
  %s8 = inlined_call_operand.vmem [shape: f32[1,128], index: 8, kind: input, shape index: {}]
  %s9 = inlined_call_operand.hbm [shape: f32[2,1,128], index: 9, kind: output, shape index: {}]
  %s10 = sld [smem:[#allocation0]]
  $region69: #{weightnet_forward.1} parent=0
    _
  %s12 = ssub.s32 1, %s10
  %s13 = scalar_select 0, %s12, %s10
  $region1: #{weightnet_forward.1} parent=0
    #allocation2 [shape = 'u8[1024]{0}', space=vmem, size = 0x400, scoped, tag = 'output window, operand 0']
    #allocation3 [shape = 's32[2]{0}', space=sflag, size = 0x8, scoped, tag = 'scoped memory for weightnet_forward.1']
    %14 = vsyncpa [#allocation3], 0
    %s15 = scalar_lea.sflag [#allocation3], 1
    %16 = vsyncpa %s15, 0
    loop: start=0, step=1, limit=4
    $region2: #{weightnet_forward.1} parent=1 // loop_pre_header
      _
    $region3: #{weightnet_forward.1} parent=1 // loop_header
      %s18 = sphi 0, %s22
      %p19 = scmp.ge.s32.totalorder %s18, 4
      %s28 = sphi 0, %s30
      %s31 = sphi 0, %s28
      %s32 = sphi 0, %s31
      %s48 = sphi 0, %s32
      %s52 = sphi 0, %s52
      %s54 = sphi 0, %s52
      %s55 = sphi 0, %s54
      %s69 = sphi 0, %s55
      %s73 = sphi 0, %s73
      %s75 = sphi 0, %s73
      %s76 = sphi 0, %s75
      %s90 = sphi 0, %s76
      %s94 = sphi 0, %s94
      %s96 = sphi 0, %s94
      %s97 = sphi 0, %s96
      %s111 = sphi 0, %s97
      %s115 = sphi 0, %s115
      %s117 = sphi 0, %s115
      %s118 = sphi 0, %s117
      %s132 = sphi 0, %s118
      %s136 = sphi 0, %s136
      %s138 = sphi 0, %s136
      %s139 = sphi 0, %s138
      %s153 = sphi 0, %s139
      %s157 = sphi 0, %s157
      %s159 = sphi 0, %s157
      %s160 = sphi 0, %s159
      %s174 = sphi 0, %s160
      %s178 = sphi 0, %s178
      %s180 = sphi 0, %s178
      %s181 = sphi 0, %s180
      %s195 = sphi 0, %s181
      %s199 = sphi 0, %s199
      %s201 = sphi 0, %s199
      %s202 = sphi 0, %s201
      %s216 = sphi 0, %s202
      %s222 = sphi 0, %s224
      %s225 = sphi 0, %s222
      %s226 = sphi 0, %s225
      %s242 = sphi 0, %s226
    $region4: #{weightnet_forward.1} parent=1 // loop_header_branch
      %21 = sbr.rel (%p19) target = $region8
    $region5: #{weightnet_forward.1} parent=1 // loop_body
      %s23 = ssub.s32 %s18, 1
      %s24 = ssub.s32 %s18, 2
      %s25 = sadd.s32 %s18, 1
      %s26 = ssub.s32 %s18, %s25
      %p27 = scmp.eq.s32.totalorder %s26, 0
      %s29 = sadd.s32 %s28, 1
      %s30 = scalar_select %p27, %s28, %s29
      %p33 = pneg %p27
      %p34 = scmp.eq.s32.totalorder %s18, 1
      %p35 = por %p33, %p34
      %p36 = scmp.ne.s32.totalorder %s28, %s31
      %p37 = scmp.eq.s32.totalorder %s18, 0
      %p38 = por %p36, %p37
      %p39 = scmp.ne.s32.totalorder %s28, %s31
      %p40 = scmp.eq.s32.totalorder %s23, 1
      %p41 = por %p39, %p40
      %p42 = scmp.ne.s32.totalorder %s31, %s32
      %p43 = scmp.eq.s32.totalorder %s23, 0
      %p44 = por %p42, %p43
      %p45 = scmp.ne.s32.totalorder %s31, %s32
      %p46 = scmp.eq.s32.totalorder %s24, 1
      %p47 = por %p45, %p46
      %p49 = scmp.ne.s32.totalorder %s32, %s48
      %p50 = scmp.eq.s32.totalorder %s24, 0
      %p51 = por %p49, %p50
      %s53 = sadd.s32 %s52, 1
      %p56 = scmp.eq.s32.totalorder %s18, 1
      %p57 = scmp.ne.s32.totalorder %s52, %s54
      %p58 = scmp.eq.s32.totalorder %s18, 0
      %p59 = por %p57, %p58
      %p60 = scmp.ne.s32.totalorder %s52, %s54
      %p61 = scmp.eq.s32.totalorder %s23, 1
      %p62 = por %p60, %p61
      %p63 = scmp.ne.s32.totalorder %s54, %s55
      %p64 = scmp.eq.s32.totalorder %s23, 0
      %p65 = por %p63, %p64
      %p66 = scmp.ne.s32.totalorder %s54, %s55
      %p67 = scmp.eq.s32.totalorder %s24, 1
      %p68 = por %p66, %p67
      %p70 = scmp.ne.s32.totalorder %s55, %s69
      %p71 = scmp.eq.s32.totalorder %s24, 0
      %p72 = por %p70, %p71
      %s74 = sadd.s32 %s73, 1
      %p77 = scmp.eq.s32.totalorder %s18, 1
      %p78 = scmp.ne.s32.totalorder %s73, %s75
      %p79 = scmp.eq.s32.totalorder %s18, 0
      %p80 = por %p78, %p79
      %p81 = scmp.ne.s32.totalorder %s73, %s75
      %p82 = scmp.eq.s32.totalorder %s23, 1
      %p83 = por %p81, %p82
      %p84 = scmp.ne.s32.totalorder %s75, %s76
      %p85 = scmp.eq.s32.totalorder %s23, 0
      %p86 = por %p84, %p85
      %p87 = scmp.ne.s32.totalorder %s75, %s76
      %p88 = scmp.eq.s32.totalorder %s24, 1
      %p89 = por %p87, %p88
      %p91 = scmp.ne.s32.totalorder %s76, %s90
      %p92 = scmp.eq.s32.totalorder %s24, 0
      %p93 = por %p91, %p92
      %s95 = sadd.s32 %s94, 1
      %p98 = scmp.eq.s32.totalorder %s18, 1
      %p99 = scmp.ne.s32.totalorder %s94, %s96
      %p100 = scmp.eq.s32.totalorder %s18, 0
      %p101 = por %p99, %p100
      %p102 = scmp.ne.s32.totalorder %s94, %s96
      %p103 = scmp.eq.s32.totalorder %s23, 1
      %p104 = por %p102, %p103
      %p105 = scmp.ne.s32.totalorder %s96, %s97
      %p106 = scmp.eq.s32.totalorder %s23, 0
      %p107 = por %p105, %p106
      %p108 = scmp.ne.s32.totalorder %s96, %s97
      %p109 = scmp.eq.s32.totalorder %s24, 1
      %p110 = por %p108, %p109
      %p112 = scmp.ne.s32.totalorder %s97, %s111
      %p113 = scmp.eq.s32.totalorder %s24, 0
      %p114 = por %p112, %p113
      %s116 = sadd.s32 %s115, 1
      %p119 = scmp.eq.s32.totalorder %s18, 1
      %p120 = scmp.ne.s32.totalorder %s115, %s117
      %p121 = scmp.eq.s32.totalorder %s18, 0
      %p122 = por %p120, %p121
      %p123 = scmp.ne.s32.totalorder %s115, %s117
      %p124 = scmp.eq.s32.totalorder %s23, 1
      %p125 = por %p123, %p124
      %p126 = scmp.ne.s32.totalorder %s117, %s118
      %p127 = scmp.eq.s32.totalorder %s23, 0
      %p128 = por %p126, %p127
      %p129 = scmp.ne.s32.totalorder %s117, %s118
      %p130 = scmp.eq.s32.totalorder %s24, 1
      %p131 = por %p129, %p130
      %p133 = scmp.ne.s32.totalorder %s118, %s132
      %p134 = scmp.eq.s32.totalorder %s24, 0
      %p135 = por %p133, %p134
      %s137 = sadd.s32 %s136, 1
      %p140 = scmp.eq.s32.totalorder %s18, 1
      %p141 = scmp.ne.s32.totalorder %s136, %s138
      %p142 = scmp.eq.s32.totalorder %s18, 0
      %p143 = por %p141, %p142
      %p144 = scmp.ne.s32.totalorder %s136, %s138
      %p145 = scmp.eq.s32.totalorder %s23, 1
      %p146 = por %p144, %p145
      %p147 = scmp.ne.s32.totalorder %s138, %s139
      %p148 = scmp.eq.s32.totalorder %s23, 0
      %p149 = por %p147, %p148
      %p150 = scmp.ne.s32.totalorder %s138, %s139
      %p151 = scmp.eq.s32.totalorder %s24, 1
      %p152 = por %p150, %p151
      %p154 = scmp.ne.s32.totalorder %s139, %s153
      %p155 = scmp.eq.s32.totalorder %s24, 0
      %p156 = por %p154, %p155
      %s158 = sadd.s32 %s157, 1
      %p161 = scmp.eq.s32.totalorder %s18, 1
      %p162 = scmp.ne.s32.totalorder %s157, %s159
      %p163 = scmp.eq.s32.totalorder %s18, 0
      %p164 = por %p162, %p163
      %p165 = scmp.ne.s32.totalorder %s157, %s159
      %p166 = scmp.eq.s32.totalorder %s23, 1
      %p167 = por %p165, %p166
      %p168 = scmp.ne.s32.totalorder %s159, %s160
      %p169 = scmp.eq.s32.totalorder %s23, 0
      %p170 = por %p168, %p169
      %p171 = scmp.ne.s32.totalorder %s159, %s160
      %p172 = scmp.eq.s32.totalorder %s24, 1
      %p173 = por %p171, %p172
      %p175 = scmp.ne.s32.totalorder %s160, %s174
      %p176 = scmp.eq.s32.totalorder %s24, 0
      %p177 = por %p175, %p176
      %s179 = sadd.s32 %s178, 1
      %p182 = scmp.eq.s32.totalorder %s18, 1
      %p183 = scmp.ne.s32.totalorder %s178, %s180
      %p184 = scmp.eq.s32.totalorder %s18, 0
      %p185 = por %p183, %p184
      %p186 = scmp.ne.s32.totalorder %s178, %s180
      %p187 = scmp.eq.s32.totalorder %s23, 1
      %p188 = por %p186, %p187
      %p189 = scmp.ne.s32.totalorder %s180, %s181
      %p190 = scmp.eq.s32.totalorder %s23, 0
      %p191 = por %p189, %p190
      %p192 = scmp.ne.s32.totalorder %s180, %s181
      %p193 = scmp.eq.s32.totalorder %s24, 1
      %p194 = por %p192, %p193
      %p196 = scmp.ne.s32.totalorder %s181, %s195
      %p197 = scmp.eq.s32.totalorder %s24, 0
      %p198 = por %p196, %p197
      %s200 = sadd.s32 %s199, 1
      %p203 = scmp.eq.s32.totalorder %s18, 1
      %p204 = scmp.ne.s32.totalorder %s199, %s201
      %p205 = scmp.eq.s32.totalorder %s18, 0
      %p206 = por %p204, %p205
      %p207 = scmp.ne.s32.totalorder %s199, %s201
      %p208 = scmp.eq.s32.totalorder %s23, 1
      %p209 = por %p207, %p208
      %p210 = scmp.ne.s32.totalorder %s201, %s202
      %p211 = scmp.eq.s32.totalorder %s23, 0
      %p212 = por %p210, %p211
      %p213 = scmp.ne.s32.totalorder %s201, %s202
      %p214 = scmp.eq.s32.totalorder %s24, 1
      %p215 = por %p213, %p214
      %p217 = scmp.ne.s32.totalorder %s202, %s216
      %p218 = scmp.eq.s32.totalorder %s24, 0
      %p219 = por %p217, %p218
      %s220 = ssub.s32 %s18, %s25
      %p221 = scmp.eq.s32.totalorder %s220, 0
      %s223 = sadd.s32 %s222, 1
      %s224 = scalar_select %p221, %s222, %s223
      %p227 = pneg %p221
      %p228 = scmp.eq.s32.totalorder %s18, 1
      %p229 = por %p227, %p228
      %p230 = scmp.ne.s32.totalorder %s222, %s225
      %p231 = scmp.eq.s32.totalorder %s18, 0
      %p232 = por %p230, %p231
      %p233 = scmp.ne.s32.totalorder %s222, %s225
      %p234 = scmp.eq.s32.totalorder %s23, 1
      %p235 = por %p233, %p234
      %p236 = scmp.ne.s32.totalorder %s225, %s226
      %p237 = scmp.eq.s32.totalorder %s23, 0
      %p238 = por %p236, %p237
      %p239 = scmp.ne.s32.totalorder %s225, %s226
      %p240 = scmp.eq.s32.totalorder %s24, 1
      %p241 = por %p239, %p240
      %p243 = scmp.ne.s32.totalorder %s226, %s242
      %p244 = scmp.eq.s32.totalorder %s24, 0
      %p245 = por %p243, %p244
      %p246 = scmp.le.s32.totalorder 1, %s18
      %p247 = scmp.lt.s32.totalorder %s18, 3
      %p248 = pnand %p246, %p247
      %p249 = pneg %p248
      // Predicated region
      $region9: #{weightnet_forward.1} parent=5 // pred_check
        _
      $region10: #{weightnet_forward.1} parent=5 // pred_check_branch
        %251 = sbr.rel (%p248) target = $region12
      $region11: #{weightnet_forward.1} parent=5 // pred_region
        %s252 = ssub.s32 %s18, 1
        // Predicated region
        $region13: #{weightnet_forward.1} parent=11 // pred_check
          %p253 = pneg %p65
        $region14: #{weightnet_forward.1} parent=11 // pred_check_branch
          %255 = sbr.rel (%p253) target = $region16
        $region15: #{weightnet_forward.1} parent=11 // pred_region
          _
        $region16: #{weightnet_forward.1} parent=11 // pred_fallthru
          _
        // Predicated region
        $region17: #{weightnet_forward.1} parent=11 // pred_check
          %p256 = pneg %p86
        $region18: #{weightnet_forward.1} parent=11 // pred_check_branch
          %258 = sbr.rel (%p256) target = $region20
        $region19: #{weightnet_forward.1} parent=11 // pred_region
          _
        $region20: #{weightnet_forward.1} parent=11 // pred_fallthru
          _
        // Predicated region
        $region21: #{weightnet_forward.1} parent=11 // pred_check
          %p259 = pneg %p107
        $region22: #{weightnet_forward.1} parent=11 // pred_check_branch
          %261 = sbr.rel (%p259) target = $region24
        $region23: #{weightnet_forward.1} parent=11 // pred_region
          _
        $region24: #{weightnet_forward.1} parent=11 // pred_fallthru
          _
        // Predicated region
        $region25: #{weightnet_forward.1} parent=11 // pred_check
          %p262 = pneg %p128
        $region26: #{weightnet_forward.1} parent=11 // pred_check_branch
          %264 = sbr.rel (%p262) target = $region28
        $region27: #{weightnet_forward.1} parent=11 // pred_region
          _
        $region28: #{weightnet_forward.1} parent=11 // pred_fallthru
          _
        // Predicated region
        $region29: #{weightnet_forward.1} parent=11 // pred_check
          %p265 = pneg %p149
        $region30: #{weightnet_forward.1} parent=11 // pred_check_branch
          %267 = sbr.rel (%p265) target = $region32
        $region31: #{weightnet_forward.1} parent=11 // pred_region
          _
        $region32: #{weightnet_forward.1} parent=11 // pred_fallthru
          _
        // Predicated region
        $region33: #{weightnet_forward.1} parent=11 // pred_check
          %p268 = pneg %p170
        $region34: #{weightnet_forward.1} parent=11 // pred_check_branch
          %270 = sbr.rel (%p268) target = $region36
        $region35: #{weightnet_forward.1} parent=11 // pred_region
          _
        $region36: #{weightnet_forward.1} parent=11 // pred_fallthru
          _
        // Predicated region
        $region37: #{weightnet_forward.1} parent=11 // pred_check
          %p271 = pneg %p191
        $region38: #{weightnet_forward.1} parent=11 // pred_check_branch
          %273 = sbr.rel (%p271) target = $region40
        $region39: #{weightnet_forward.1} parent=11 // pred_region
          _
        $region40: #{weightnet_forward.1} parent=11 // pred_fallthru
          _
        // Predicated region
        $region41: #{weightnet_forward.1} parent=11 // pred_check
          %p274 = pneg %p212
        $region42: #{weightnet_forward.1} parent=11 // pred_check_branch
          %276 = sbr.rel (%p274) target = $region44
        $region43: #{weightnet_forward.1} parent=11 // pred_region
          _
        $region44: #{weightnet_forward.1} parent=11 // pred_fallthru
          _
      $region12: #{weightnet_forward.1} parent=5 // pred_fallthru
        _
      %p277 = scmp.lt.s32.totalorder %s18, 2
      // Predicated region
      $region45: #{weightnet_forward.1} parent=5 // pred_check
        %p278 = pneg %p277
      $region46: #{weightnet_forward.1} parent=5 // pred_check_branch
        %280 = sbr.rel (%p278) target = $region48
      $region47: #{weightnet_forward.1} parent=5 // pred_region
        // Predicated region
        $region49: #{weightnet_forward.1} parent=47 // pred_check
          %p281 = pneg %p38
        $region50: #{weightnet_forward.1} parent=47 // pred_check_branch
          %283 = sbr.rel (%p281) target = $region52
        $region51: #{weightnet_forward.1} parent=47 // pred_region
          %p284 = scmp.lt.s32.totalorder %s18, 1
          %s285 = scalar_select %p284, %s18, 1
          %s286 = smul.addr %s285, 2
          %s287 = smul.addr %s286, 8
          %s288 = scalar_lea.vmem %s0, %s287
        $region52: #{weightnet_forward.1} parent=47 // pred_fallthru
          _
      $region48: #{weightnet_forward.1} parent=5 // pred_fallthru
        _
      %p289 = scmp.le.s32.totalorder 1, %s18
      %p290 = scmp.lt.s32.totalorder %s18, 3
      %p291 = pnand %p289, %p290
      %p292 = pneg %p291
      // Predicated region
      $region53: #{weightnet_forward.1} parent=5 // pred_check
        _
      $region54: #{weightnet_forward.1} parent=5 // pred_check_branch
        %294 = sbr.rel (%p291) target = $region56
      $region55: #{weightnet_forward.1} parent=5 // pred_region
        %s295 = ssub.s32 %s18, 1
        %p296 = scmp.lt.s32.totalorder %s23, 1
        %s297 = scalar_select %p296, %s23, 1
        %s298 = smul.addr %s297, 2
        %s299 = smul.addr %s298, 8
        %s300 = scalar_lea.vmem %s0, %s299
        %p301 = pneg %p44
        %p302 = pneg %p41
        %p303 = pneg %p65
        %p304 = pneg %p62
        %p305 = pneg %p86
        %p306 = pneg %p83
        %p307 = pneg %p107
        %p308 = pneg %p104
        %p309 = pneg %p128
        %p310 = pneg %p125
        %p311 = pneg %p149
        %p312 = pneg %p146
        %p313 = pneg %p170
        %p314 = pneg %p167
        %p315 = pneg %p191
        %p316 = pneg %p188
        %p317 = pneg %p212
        %p318 = pneg %p209
        %p319 = pneg %p238
        %p320 = pneg %p235
        %s321 = sand.u32 %s225, 1
        %s322 = scalar_lea.sflag [#allocation3], %s321
        %s323 = sand.u32 %s225, 1
        %s324 = scalar_lea.vmem [#allocation2], %s323
        %p325 = scmp.lt.s32.totalorder %s23, 1
        %s326 = scalar_select %p325, %s23, 1
        %s327 = smul.addr %s326, 2
        %s328 = smul.addr %s327, 8
        %s329 = scalar_lea.vmem %s0, %s328
        %v331 = vld [vmem:[%s329] sm:$0xff]
        %v332 = vld [vmem:[%s329 + $0x8] sm:$0xff]
        %v333 = vlaneseq
        %v334 = vand.u32 %v333, 127
        %v335 = vadd.s32 %v334, 128
        %v336 = vand.u32 %v334, 255
        %v337 = vand.u32 %v335, 255
        %v338 = vand.u32 %v336, 15
        %v339 = vand.u32 %v337, 15
        %v340 = vshra.s32 %v336, 4
        %v341 = vshra.s32 %v337, 4
        %vm342 = vcmp.ge.s32.totalorder %v338, 1
        %vm343 = vcmp.ge.s32.totalorder %v339, 1
        %vm344 = vcmp.le.s32.totalorder %v338, 15
        %vm345 = vcmp.le.s32.totalorder %v339, 15
        %vm346 = vmand %vm342, %vm344
        %vm347 = vmand %vm343, %vm345
        %vm348 = vcmp.ge.s32.totalorder %v338, 0
        %vm349 = vcmp.ge.s32.totalorder %v339, 0
        %vm350 = vcmp.le.s32.totalorder %v338, 14
        %vm351 = vcmp.le.s32.totalorder %v339, 14
        %vm352 = vmand %vm348, %vm350
        %vm353 = vmand %vm349, %vm351
        %vm354 = vcmp.ge.s32.totalorder %v340, 1
        %vm355 = vcmp.ge.s32.totalorder %v341, 1
        %vm356 = vcmp.le.s32.totalorder %v340, 15
        %vm357 = vcmp.le.s32.totalorder %v341, 15
        %vm358 = vmand %vm354, %vm356
        %vm359 = vmand %vm355, %vm357
        %vm360 = vcmp.ge.s32.totalorder %v340, 0
        %vm361 = vcmp.ge.s32.totalorder %v341, 0
        %vm362 = vcmp.le.s32.totalorder %v340, 14
        %vm363 = vcmp.le.s32.totalorder %v341, 14
        %vm364 = vmand %vm360, %vm362
        %vm365 = vmand %vm361, %vm363
        %vm366 = vmand %vm358, %vm346
        %vm367 = vmand %vm359, %vm347
        %371 = vrot.lane.b32.xlu0 0.0, 17
        %v372 = vpop.permute.xlu0 %371
        %373 = vrot.lane.b32.xlu0 %v331, 17
        %v374 = vpop.permute.xlu0 %373
        %375 = vrot.lane.b32.xlu0 %v332, 17
        %v376 = vpop.permute.xlu0 %375
        %vm377 = vcmask 138240
        %v378 = vsel %vm377, %v372, %v374
        %v379 = vsel %vm377, %v374, %v376
        %v382 = vsel %vm366, %v378, 0.0
        %v383 = vsel %vm367, %v379, 0.0
        %384 = vrot.lane.b32.xlu0 0.0, 16
        %v385 = vpop.permute.xlu0 %384
        %386 = vrot.lane.b32.xlu0 %v331, 16
        %v387 = vpop.permute.xlu0 %386
        %388 = vrot.lane.b32.xlu0 %v332, 16
        %v389 = vpop.permute.xlu0 %388
        %vm390 = vcmask 130048
        %v391 = vsel %vm390, %v385, %v387
        %v392 = vsel %vm390, %v387, %v389
        %v395 = vsel %vm358, %v391, 0.0
        %v396 = vsel %vm359, %v392, 0.0
        %vm397 = vmand %vm358, %vm352
        %vm398 = vmand %vm359, %vm353
        %399 = vrot.lane.b32.xlu0 0.0, 15
        %v400 = vpop.permute.xlu0 %399
        %401 = vrot.lane.b32.xlu0 %v331, 15
        %v402 = vpop.permute.xlu0 %401
        %403 = vrot.lane.b32.xlu0 %v332, 15
        %v404 = vpop.permute.xlu0 %403
        %vm405 = vcmask 121856
        %v406 = vsel %vm405, %v400, %v402
        %v407 = vsel %vm405, %v402, %v404
        %v410 = vsel %vm397, %v406, 0.0
        %v411 = vsel %vm398, %v407, 0.0
        %412 = vrot.lane.b32.xlu0 0.0, 1
        %v413 = vpop.permute.xlu0 %412
        %414 = vrot.lane.b32.xlu0 %v331, 1
        %v415 = vpop.permute.xlu0 %414
        %416 = vrot.lane.b32.xlu0 %v332, 1
        %v417 = vpop.permute.xlu0 %416
        %vm418 = vcmask 7168
        %v419 = vsel %vm418, %v413, %v415
        %v420 = vsel %vm418, %v415, %v417
        %v423 = vsel %vm346, %v419, 0.0
        %v424 = vsel %vm347, %v420, 0.0
        %425 = vrot.lane.b32.xlu0 %v331, 127
        %v426 = vpop.permute.xlu0 %425
        %427 = vrot.lane.b32.xlu0 %v332, 127
        %v428 = vpop.permute.xlu0 %427
        %429 = vrot.lane.b32.xlu0 0.0, 127
        %v430 = vpop.permute.xlu0 %429
        %vm431 = vcmask 1039360
        %v432 = vsel %vm431, %v426, %v428
        %v433 = vsel %vm431, %v428, %v430
        %v436 = vsel %vm352, %v432, 0.0
        %v437 = vsel %vm353, %v433, 0.0
        %vm438 = vmand %vm364, %vm346
        %vm439 = vmand %vm365, %vm347
        %440 = vrot.lane.b32.xlu0 %v331, 113
        %v441 = vpop.permute.xlu0 %440
        %442 = vrot.lane.b32.xlu0 %v332, 113
        %v443 = vpop.permute.xlu0 %442
        %444 = vrot.lane.b32.xlu0 0.0, 113
        %v445 = vpop.permute.xlu0 %444
        %vm446 = vcmask 924672
        %v447 = vsel %vm446, %v441, %v443
        %v448 = vsel %vm446, %v443, %v445
        %v451 = vsel %vm438, %v447, 0.0
        %v452 = vsel %vm439, %v448, 0.0
        %453 = vrot.lane.b32.xlu0 %v331, 112
        %v454 = vpop.permute.xlu0 %453
        %455 = vrot.lane.b32.xlu0 %v332, 112
        %v456 = vpop.permute.xlu0 %455
        %457 = vrot.lane.b32.xlu0 0.0, 112
        %v458 = vpop.permute.xlu0 %457
        %vm459 = vcmask 916480
        %v460 = vsel %vm459, %v454, %v456
        %v461 = vsel %vm459, %v456, %v458
        %v464 = vsel %vm364, %v460, 0.0
        %v465 = vsel %vm365, %v461, 0.0
        %vm466 = vmand %vm364, %vm352
        %vm467 = vmand %vm365, %vm353
        %468 = vrot.lane.b32.xlu0 %v331, 111
        %v469 = vpop.permute.xlu0 %468
        %470 = vrot.lane.b32.xlu0 %v332, 111
        %v471 = vpop.permute.xlu0 %470
        %472 = vrot.lane.b32.xlu0 0.0, 111
        %v473 = vpop.permute.xlu0 %472
        %vm474 = vcmask 908288
        %v475 = vsel %vm474, %v469, %v471
        %v476 = vsel %vm474, %v471, %v473
        %v479 = vsel %vm466, %v475, 0.0
        %v480 = vsel %vm467, %v476, 0.0
        %v481 = vpack.c.bf16 %v395, %v382
        %v482 = vpack.c.bf16 %v396, %v383
        %v483 = vpack.c.bf16 %v423, %v410
        %v484 = vpack.c.bf16 %v424, %v411
        %v485 = vpack.c.bf16 %v436, %v331
        %v486 = vpack.c.bf16 %v437, %v332
        %v487 = vpack.c.bf16 %v464, %v451
        %v488 = vpack.c.bf16 %v465, %v452
        %v489 = vpack.c.bf16 %v479, %v479
        %v490 = vpack.c.bf16 %v480, %v480
        %v491 = vld [vmem:[%s1] sm:$0xf]
        %v492 = vld [vmem:[%s2] sm:$0xff]
        %494 = vset.pattern.permute.xlu0 0
        %495 = vperm.xlu0 %494, %v492
        %v496 = vpop.permute.xlu0 %495
        %vm498 = vcmask 588800
        %v500 = vsel %vm498, %v491, 0
        %vm502 = vcmask 1043456
        %v504 = vsel %vm502, %v489, 0
        %v507 = vsel %vm502, %v490, 0
        %509 = vmatprep.subr.bf16.mxu0 %v482
        %510 = vmatpush1.bf16.msra.mxu0 %v481
        %511 = vmatprep.subr.bf16.mxu0 %v484
        %512 = vmatpush1.bf16.msra.mxu0 %v483
        %513 = vmatprep.subr.bf16.mxu0 %v486
        %514 = vmatpush1.bf16.msra.mxu0 %v485
        %515 = vmatprep.subr.bf16.mxu0 %v488
        %516 = vmatpush1.bf16.msra.mxu0 %v487
        %517 = vmatprep.subr.bf16.mxu0 %v507
        %518 = vmatpush1.bf16.msra.mxu0 %v504
        %519 = vmatprep.subr.bf16.mxu0 0
        %520 = vmatpush1.bf16.msra.mxu0 0
        %521 = vmatprep.subr.bf16.mxu0 0
        %522 = vmatpush1.bf16.msra.mxu0 0
        %523 = vmatprep.subr.bf16.mxu0 0
        %524 = vmatpush1.bf16.msra.mxu0 0
        %525 = vmatprep.subr.bf16.mxu0 0
        %526 = vmatpush1.bf16.msra.mxu0 0
        %527 = vmatprep.subr.bf16.mxu0 0
        %528 = vmatpush1.bf16.msra.mxu0 0
        %529 = vmatprep.subr.bf16.mxu0 0
        %530 = vmatpush1.bf16.msra.mxu0 0
        %531 = vmatprep.subr.bf16.mxu0 0
        %532 = vmatpush1.bf16.msra.mxu0 0
        %533 = vmatprep.subr.bf16.mxu0 0
        %534 = vmatpush1.bf16.msra.mxu0 0
        %535 = vmatprep.subr.bf16.mxu0 0
        %536 = vmatpush1.bf16.msra.mxu0 0
        %537 = vmatprep.subr.bf16.mxu0 0
        %538 = vmatpush1.bf16.msra.mxu0 0
        %539 = vmatprep.subr.bf16.mxu0 0
        %540 = vmatpush1.bf16.msra.mxu0 0
        %541 = vmatprep.mubr.bf16.mxu0 0
        %542 = vmatmul.mubr.bf16.gmra.mrb[0].mxu0 %v500
        %v543 = vpop.f32.mrb[0].mxu0
        %v544 = vadd.f32 %v496, %v543
        %v545 = vpop.f32.mrb[0].mxu0
        %v546 = vadd.f32 %v496, %v545
        %v547 = vpop.f32.mrb[0].mxu0
        %v548 = vpop.f32.mrb[0].mxu0
        %549 = vdwg.mxu0
        %v550 = vmax.f32 %v544, 0.0
        %v551 = vmax.f32 %v546, 0.0
        %554 = vrot.lane.b32.xlu0 %v550, 17
        %v555 = vpop.permute.xlu0 %554
        %556 = vrot.lane.b32.xlu0 %v551, 17
        %v557 = vpop.permute.xlu0 %556
        %v558 = vsel %vm377, %v372, %v555
        %v559 = vsel %vm377, %v555, %v557
        %v562 = vsel %vm366, %v558, 0.0
        %v563 = vsel %vm367, %v559, 0.0
        %564 = vrot.lane.b32.xlu0 %v550, 16
        %v565 = vpop.permute.xlu0 %564
        %566 = vrot.lane.b32.xlu0 %v551, 16
        %v567 = vpop.permute.xlu0 %566
        %v568 = vsel %vm390, %v385, %v565
        %v569 = vsel %vm390, %v565, %v567
        %v572 = vsel %vm358, %v568, 0.0
        %v573 = vsel %vm359, %v569, 0.0
        %574 = vrot.lane.b32.xlu0 %v550, 15
        %v575 = vpop.permute.xlu0 %574
        %576 = vrot.lane.b32.xlu0 %v551, 15
        %v577 = vpop.permute.xlu0 %576
        %v578 = vsel %vm405, %v400, %v575
        %v579 = vsel %vm405, %v575, %v577
        %v582 = vsel %vm397, %v578, 0.0
        %v583 = vsel %vm398, %v579, 0.0
        %584 = vrot.lane.b32.xlu0 %v550, 1
        %v585 = vpop.permute.xlu0 %584
        %586 = vrot.lane.b32.xlu0 %v551, 1
        %v587 = vpop.permute.xlu0 %586
        %v588 = vsel %vm418, %v413, %v585
        %v589 = vsel %vm418, %v585, %v587
        %v592 = vsel %vm346, %v588, 0.0
        %v593 = vsel %vm347, %v589, 0.0
        %594 = vrot.lane.b32.xlu0 %v550, 127
        %v595 = vpop.permute.xlu0 %594
        %596 = vrot.lane.b32.xlu0 %v551, 127
        %v597 = vpop.permute.xlu0 %596
        %v598 = vsel %vm431, %v595, %v597
        %v599 = vsel %vm431, %v597, %v430
        %v602 = vsel %vm352, %v598, 0.0
        %v603 = vsel %vm353, %v599, 0.0
        %604 = vrot.lane.b32.xlu0 %v550, 113
        %v605 = vpop.permute.xlu0 %604
        %606 = vrot.lane.b32.xlu0 %v551, 113
        %v607 = vpop.permute.xlu0 %606
        %v608 = vsel %vm446, %v605, %v607
        %v609 = vsel %vm446, %v607, %v445
        %v612 = vsel %vm438, %v608, 0.0
        %v613 = vsel %vm439, %v609, 0.0
        %614 = vrot.lane.b32.xlu0 %v550, 112
        %v615 = vpop.permute.xlu0 %614
        %616 = vrot.lane.b32.xlu0 %v551, 112
        %v617 = vpop.permute.xlu0 %616
        %v618 = vsel %vm459, %v615, %v617
        %v619 = vsel %vm459, %v617, %v458
        %v622 = vsel %vm364, %v618, 0.0
        %v623 = vsel %vm365, %v619, 0.0
        %624 = vrot.lane.b32.xlu0 %v550, 111
        %v625 = vpop.permute.xlu0 %624
        %626 = vrot.lane.b32.xlu0 %v551, 111
        %v627 = vpop.permute.xlu0 %626
        %v628 = vsel %vm474, %v625, %v627
        %v629 = vsel %vm474, %v627, %v473
        %v632 = vsel %vm466, %v628, 0.0
        %v633 = vsel %vm467, %v629, 0.0
        %v634 = vpack.c.bf16 %v572, %v562
        %v635 = vpack.c.bf16 %v573, %v563
        %v636 = vpack.c.bf16 %v592, %v582
        %v637 = vpack.c.bf16 %v593, %v583
        %v638 = vpack.c.bf16 %v602, %v550
        %v639 = vpack.c.bf16 %v603, %v551
        %v640 = vpack.c.bf16 %v622, %v612
        %v641 = vpack.c.bf16 %v623, %v613
        %v642 = vpack.c.bf16 %v632, %v632
        %v643 = vpack.c.bf16 %v633, %v633
        %v644 = vld [vmem:[%s3] sm:$0xf]
        %v645 = vld [vmem:[%s4] sm:$0xff]
        %647 = vset.pattern.permute.xlu0 0
        %648 = vperm.xlu0 %647, %v645
        %v649 = vpop.permute.xlu0 %648
        %v652 = vsel %vm498, %v644, 0
        %v655 = vsel %vm502, %v642, 0
        %v658 = vsel %vm502, %v643, 0
        %660 = vmatprep.subr.bf16.mxu0 %v635
        %661 = vmatpush1.bf16.msra.mxu0 %v634
        %662 = vmatprep.subr.bf16.mxu0 %v637
        %663 = vmatpush1.bf16.msra.mxu0 %v636
        %664 = vmatprep.subr.bf16.mxu0 %v639
        %665 = vmatpush1.bf16.msra.mxu0 %v638
        %666 = vmatprep.subr.bf16.mxu0 %v641
        %667 = vmatpush1.bf16.msra.mxu0 %v640
        %668 = vmatprep.subr.bf16.mxu0 %v658
        %669 = vmatpush1.bf16.msra.mxu0 %v655
        %670 = vmatprep.subr.bf16.mxu0 0
        %671 = vmatpush1.bf16.msra.mxu0 0
        %672 = vmatprep.subr.bf16.mxu0 0
        %673 = vmatpush1.bf16.msra.mxu0 0
        %674 = vmatprep.subr.bf16.mxu0 0
        %675 = vmatpush1.bf16.msra.mxu0 0
        %676 = vmatprep.subr.bf16.mxu0 0
        %677 = vmatpush1.bf16.msra.mxu0 0
        %678 = vmatprep.subr.bf16.mxu0 0
        %679 = vmatpush1.bf16.msra.mxu0 0
        %680 = vmatprep.subr.bf16.mxu0 0
        %681 = vmatpush1.bf16.msra.mxu0 0
        %682 = vmatprep.subr.bf16.mxu0 0
        %683 = vmatpush1.bf16.msra.mxu0 0
        %684 = vmatprep.subr.bf16.mxu0 0
        %685 = vmatpush1.bf16.msra.mxu0 0
        %686 = vmatprep.subr.bf16.mxu0 0
        %687 = vmatpush1.bf16.msra.mxu0 0
        %688 = vmatprep.subr.bf16.mxu0 0
        %689 = vmatpush1.bf16.msra.mxu0 0
        %690 = vmatprep.subr.bf16.mxu0 0
        %691 = vmatpush1.bf16.msra.mxu0 0
        %692 = vmatprep.mubr.bf16.mxu0 0
        %693 = vmatmul.mubr.bf16.gmra.mrb[0].mxu0 %v652
        %v694 = vpop.f32.mrb[0].mxu0
        %v695 = vadd.f32 %v649, %v694
        %v696 = vpop.f32.mrb[0].mxu0
        %v697 = vadd.f32 %v649, %v696
        %v698 = vpop.f32.mrb[0].mxu0
        %v699 = vpop.f32.mrb[0].mxu0
        %700 = vdwg.mxu0
        %v701 = vmax.f32 %v695, 0.0
        %v702 = vmax.f32 %v697, 0.0
        %v705 = vrot.slane %v701, 1
        %v706 = vrot.slane %v702, 1
        %v709 = vrot.slane %v701, 2
        %v710 = vrot.slane %v702, 2
        %v713 = vrot.slane %v701, 3
        %v714 = vrot.slane %v702, 3
        %v717 = vrot.slane %v701, 4
        %v718 = vrot.slane %v702, 4
        %v721 = vrot.slane %v701, 5
        %v722 = vrot.slane %v702, 5
        %v725 = vrot.slane %v701, 6
        %v726 = vrot.slane %v702, 6
        %v729 = vrot.slane %v701, 7
        %v730 = vrot.slane %v702, 7
        %v733 = vpack.c.bf16 %v701, %v701
        %v734 = vpack.c.bf16 %v702, %v702
        %v735 = vpack.c.bf16 %v705, %v705
        %v736 = vpack.c.bf16 %v706, %v706
        %v737 = vpack.c.bf16 %v709, %v709
        %v738 = vpack.c.bf16 %v710, %v710
        %v739 = vpack.c.bf16 %v713, %v713
        %v740 = vpack.c.bf16 %v714, %v714
        %v741 = vpack.c.bf16 %v717, %v717
        %v742 = vpack.c.bf16 %v718, %v718
        %v743 = vpack.c.bf16 %v721, %v721
        %v744 = vpack.c.bf16 %v722, %v722
        %v745 = vpack.c.bf16 %v725, %v725
        %v746 = vpack.c.bf16 %v726, %v726
        %v747 = vpack.c.bf16 %v729, %v729
        %v748 = vpack.c.bf16 %v730, %v730
        %v749 = vld [vmem:[%s5] sm:$0xf]
        %v750 = vld [vmem:[%s5 + $0x4] sm:$0xf]
        %v751 = vld [vmem:[%s5 + $0x8] sm:$0xf]
        %v752 = vld [vmem:[%s5 + $0xc] sm:$0xf]
        %v753 = vld [vmem:[%s5 + $0x10] sm:$0xf]
        %v754 = vld [vmem:[%s5 + $0x14] sm:$0xf]
        %v755 = vld [vmem:[%s5 + $0x18] sm:$0xf]
        %v756 = vld [vmem:[%s5 + $0x1c] sm:$0xf]
        %v757 = vld [vmem:[%s5 + $0x20] sm:$0xf]
        %v758 = vld [vmem:[%s5 + $0x24] sm:$0xf]
        %v759 = vld [vmem:[%s5 + $0x28] sm:$0xf]
        %v760 = vld [vmem:[%s5 + $0x2c] sm:$0xf]
        %v761 = vld [vmem:[%s5 + $0x30] sm:$0xf]
        %v762 = vld [vmem:[%s5 + $0x34] sm:$0xf]
        %v763 = vld [vmem:[%s5 + $0x38] sm:$0xf]
        %v764 = vld [vmem:[%s5 + $0x3c] sm:$0xf]
        %v765 = vld [vmem:[%s5 + $0x40] sm:$0xf]
        %v766 = vld [vmem:[%s5 + $0x44] sm:$0xf]
        %v767 = vld [vmem:[%s5 + $0x48] sm:$0xf]
        %v768 = vld [vmem:[%s5 + $0x4c] sm:$0xf]
        %v769 = vld [vmem:[%s5 + $0x50] sm:$0xf]
        %v770 = vld [vmem:[%s5 + $0x54] sm:$0xf]
        %v771 = vld [vmem:[%s5 + $0x58] sm:$0xf]
        %v772 = vld [vmem:[%s5 + $0x5c] sm:$0xf]
        %v773 = vld [vmem:[%s5 + $0x60] sm:$0xf]
        %v774 = vld [vmem:[%s5 + $0x64] sm:$0xf]
        %v775 = vld [vmem:[%s5 + $0x68] sm:$0xf]
        %v776 = vld [vmem:[%s5 + $0x6c] sm:$0xf]
        %v777 = vld [vmem:[%s5 + $0x70] sm:$0xf]
        %v778 = vld [vmem:[%s5 + $0x74] sm:$0xf]
        %v779 = vld [vmem:[%s5 + $0x78] sm:$0xf]
        %v780 = vld [vmem:[%s5 + $0x7c] sm:$0xf]
        %v781 = vld [vmem:[%s5 + $0x80] sm:$0xf]
        %v782 = vld [vmem:[%s5 + $0x84] sm:$0xf]
        %v783 = vld [vmem:[%s5 + $0x88] sm:$0xf]
        %v784 = vld [vmem:[%s5 + $0x8c] sm:$0xf]
        %v785 = vld [vmem:[%s5 + $0x90] sm:$0xf]
        %v786 = vld [vmem:[%s5 + $0x94] sm:$0xf]
        %v787 = vld [vmem:[%s5 + $0x98] sm:$0xf]
        %v788 = vld [vmem:[%s5 + $0x9c] sm:$0xf]
        %v789 = vld [vmem:[%s5 + $0xa0] sm:$0xf]
        %v790 = vld [vmem:[%s5 + $0xa4] sm:$0xf]
        %v791 = vld [vmem:[%s5 + $0xa8] sm:$0xf]
        %v792 = vld [vmem:[%s5 + $0xac] sm:$0xf]
        %v793 = vld [vmem:[%s5 + $0xb0] sm:$0xf]
        %v794 = vld [vmem:[%s5 + $0xb4] sm:$0xf]
        %v795 = vld [vmem:[%s5 + $0xb8] sm:$0xf]
        %v796 = vld [vmem:[%s5 + $0xbc] sm:$0xf]
        %v797 = vld [vmem:[%s5 + $0xc0] sm:$0xf]
        %v798 = vld [vmem:[%s5 + $0xc4] sm:$0xf]
        %v799 = vld [vmem:[%s5 + $0xc8] sm:$0xf]
        %v800 = vld [vmem:[%s5 + $0xcc] sm:$0xf]
        %v801 = vld [vmem:[%s5 + $0xd0] sm:$0xf]
        %v802 = vld [vmem:[%s5 + $0xd4] sm:$0xf]
        %v803 = vld [vmem:[%s5 + $0xd8] sm:$0xf]
        %v804 = vld [vmem:[%s5 + $0xdc] sm:$0xf]
        %v805 = vld [vmem:[%s5 + $0xe0] sm:$0xf]
        %v806 = vld [vmem:[%s5 + $0xe4] sm:$0xf]
        %v807 = vld [vmem:[%s5 + $0xe8] sm:$0xf]
        %v808 = vld [vmem:[%s5 + $0xec] sm:$0xf]
        %v809 = vld [vmem:[%s5 + $0xf0] sm:$0xf]
        %v810 = vld [vmem:[%s5 + $0xf4] sm:$0xf]
        %v811 = vld [vmem:[%s5 + $0xf8] sm:$0xf]
        %v812 = vld [vmem:[%s5 + $0xfc] sm:$0xf]
        %v813 = vld [vmem:[%s5 + $0x100] sm:$0xf]
        %v814 = vld [vmem:[%s5 + $0x104] sm:$0xf]
        %v815 = vld [vmem:[%s5 + $0x108] sm:$0xf]
        %v816 = vld [vmem:[%s5 + $0x10c] sm:$0xf]
        %v817 = vld [vmem:[%s5 + $0x110] sm:$0xf]
        %v818 = vld [vmem:[%s5 + $0x114] sm:$0xf]
        %v819 = vld [vmem:[%s5 + $0x118] sm:$0xf]
        %v820 = vld [vmem:[%s5 + $0x11c] sm:$0xf]
        %v821 = vld [vmem:[%s5 + $0x120] sm:$0xf]
        %v822 = vld [vmem:[%s5 + $0x124] sm:$0xf]
        %v823 = vld [vmem:[%s5 + $0x128] sm:$0xf]
        %v824 = vld [vmem:[%s5 + $0x12c] sm:$0xf]
        %v825 = vld [vmem:[%s5 + $0x130] sm:$0xf]
        %v826 = vld [vmem:[%s5 + $0x134] sm:$0xf]
        %v827 = vld [vmem:[%s5 + $0x138] sm:$0xf]
        %v828 = vld [vmem:[%s5 + $0x13c] sm:$0xf]
        %v829 = vld [vmem:[%s5 + $0x140] sm:$0xf]
        %v830 = vld [vmem:[%s5 + $0x144] sm:$0xf]
        %v831 = vld [vmem:[%s5 + $0x148] sm:$0xf]
        %v832 = vld [vmem:[%s5 + $0x14c] sm:$0xf]
        %v833 = vld [vmem:[%s5 + $0x150] sm:$0xf]
        %v834 = vld [vmem:[%s5 + $0x154] sm:$0xf]
        %v835 = vld [vmem:[%s5 + $0x158] sm:$0xf]
        %v836 = vld [vmem:[%s5 + $0x15c] sm:$0xf]
        %v837 = vld [vmem:[%s5 + $0x160] sm:$0xf]
        %v838 = vld [vmem:[%s5 + $0x164] sm:$0xf]
        %v839 = vld [vmem:[%s5 + $0x168] sm:$0xf]
        %v840 = vld [vmem:[%s5 + $0x16c] sm:$0xf]
        %v841 = vld [vmem:[%s5 + $0x170] sm:$0xf]
        %v842 = vld [vmem:[%s5 + $0x174] sm:$0xf]
        %v843 = vld [vmem:[%s5 + $0x178] sm:$0xf]
        %v844 = vld [vmem:[%s5 + $0x17c] sm:$0xf]
        %v845 = vld [vmem:[%s5 + $0x180] sm:$0xf]
        %v846 = vld [vmem:[%s5 + $0x184] sm:$0xf]
        %v847 = vld [vmem:[%s5 + $0x188] sm:$0xf]
        %v848 = vld [vmem:[%s5 + $0x18c] sm:$0xf]
        %v849 = vld [vmem:[%s5 + $0x190] sm:$0xf]
        %v850 = vld [vmem:[%s5 + $0x194] sm:$0xf]
        %v851 = vld [vmem:[%s5 + $0x198] sm:$0xf]
        %v852 = vld [vmem:[%s5 + $0x19c] sm:$0xf]
        %v853 = vld [vmem:[%s5 + $0x1a0] sm:$0xf]
        %v854 = vld [vmem:[%s5 + $0x1a4] sm:$0xf]
        %v855 = vld [vmem:[%s5 + $0x1a8] sm:$0xf]
        %v856 = vld [vmem:[%s5 + $0x1ac] sm:$0xf]
        %v857 = vld [vmem:[%s5 + $0x1b0] sm:$0xf]
        %v858 = vld [vmem:[%s5 + $0x1b4] sm:$0xf]
        %v859 = vld [vmem:[%s5 + $0x1b8] sm:$0xf]
        %v860 = vld [vmem:[%s5 + $0x1bc] sm:$0xf]
        %v861 = vld [vmem:[%s5 + $0x1c0] sm:$0xf]
        %v862 = vld [vmem:[%s5 + $0x1c4] sm:$0xf]
        %v863 = vld [vmem:[%s5 + $0x1c8] sm:$0xf]
        %v864 = vld [vmem:[%s5 + $0x1cc] sm:$0xf]
        %v865 = vld [vmem:[%s5 + $0x1d0] sm:$0xf]
        %v866 = vld [vmem:[%s5 + $0x1d4] sm:$0xf]
        %v867 = vld [vmem:[%s5 + $0x1d8] sm:$0xf]
        %v868 = vld [vmem:[%s5 + $0x1dc] sm:$0xf]
        %v869 = vld [vmem:[%s5 + $0x1e0] sm:$0xf]
        %v870 = vld [vmem:[%s5 + $0x1e4] sm:$0xf]
        %v871 = vld [vmem:[%s5 + $0x1e8] sm:$0xf]
        %v872 = vld [vmem:[%s5 + $0x1ec] sm:$0xf]
        %v873 = vld [vmem:[%s5 + $0x1f0] sm:$0xf]
        %v874 = vld [vmem:[%s5 + $0x1f4] sm:$0xf]
        %v875 = vld [vmem:[%s5 + $0x1f8] sm:$0xf]
        %v876 = vld [vmem:[%s5 + $0x1fc] sm:$0xf]
        %v877 = vld [vmem:[%s5 + $0x200] sm:$0xf]
        %v878 = vld [vmem:[%s5 + $0x204] sm:$0xf]
        %v879 = vld [vmem:[%s5 + $0x208] sm:$0xf]
        %v880 = vld [vmem:[%s5 + $0x20c] sm:$0xf]
        %v881 = vld [vmem:[%s5 + $0x210] sm:$0xf]
        %v882 = vld [vmem:[%s5 + $0x214] sm:$0xf]
        %v883 = vld [vmem:[%s5 + $0x218] sm:$0xf]
        %v884 = vld [vmem:[%s5 + $0x21c] sm:$0xf]
        %v885 = vld [vmem:[%s5 + $0x220] sm:$0xf]
        %v886 = vld [vmem:[%s5 + $0x224] sm:$0xf]
        %v887 = vld [vmem:[%s5 + $0x228] sm:$0xf]
        %v888 = vld [vmem:[%s5 + $0x22c] sm:$0xf]
        %v889 = vld [vmem:[%s5 + $0x230] sm:$0xf]
        %v890 = vld [vmem:[%s5 + $0x234] sm:$0xf]
        %v891 = vld [vmem:[%s5 + $0x238] sm:$0xf]
        %v892 = vld [vmem:[%s5 + $0x23c] sm:$0xf]
        %v893 = vld [vmem:[%s5 + $0x240] sm:$0xf]
        %v894 = vld [vmem:[%s5 + $0x244] sm:$0xf]
        %v895 = vld [vmem:[%s5 + $0x248] sm:$0xf]
        %v896 = vld [vmem:[%s5 + $0x24c] sm:$0xf]
        %v897 = vld [vmem:[%s5 + $0x250] sm:$0xf]
        %v898 = vld [vmem:[%s5 + $0x254] sm:$0xf]
        %v899 = vld [vmem:[%s5 + $0x258] sm:$0xf]
        %v900 = vld [vmem:[%s5 + $0x25c] sm:$0xf]
        %v901 = vld [vmem:[%s5 + $0x260] sm:$0xf]
        %v902 = vld [vmem:[%s5 + $0x264] sm:$0xf]
        %v903 = vld [vmem:[%s5 + $0x268] sm:$0xf]
        %v904 = vld [vmem:[%s5 + $0x26c] sm:$0xf]
        %v905 = vld [vmem:[%s5 + $0x270] sm:$0xf]
        %v906 = vld [vmem:[%s5 + $0x274] sm:$0xf]
        %v907 = vld [vmem:[%s5 + $0x278] sm:$0xf]
        %v908 = vld [vmem:[%s5 + $0x27c] sm:$0xf]
        %v909 = vld [vmem:[%s5 + $0x280] sm:$0xf]
        %v910 = vld [vmem:[%s5 + $0x284] sm:$0xf]
        %v911 = vld [vmem:[%s5 + $0x288] sm:$0xf]
        %v912 = vld [vmem:[%s5 + $0x28c] sm:$0xf]
        %v913 = vld [vmem:[%s5 + $0x290] sm:$0xf]
        %v914 = vld [vmem:[%s5 + $0x294] sm:$0xf]
        %v915 = vld [vmem:[%s5 + $0x298] sm:$0xf]
        %v916 = vld [vmem:[%s5 + $0x29c] sm:$0xf]
        %v917 = vld [vmem:[%s5 + $0x2a0] sm:$0xf]
        %v918 = vld [vmem:[%s5 + $0x2a4] sm:$0xf]
        %v919 = vld [vmem:[%s5 + $0x2a8] sm:$0xf]
        %v920 = vld [vmem:[%s5 + $0x2ac] sm:$0xf]
        %v921 = vld [vmem:[%s5 + $0x2b0] sm:$0xf]
        %v922 = vld [vmem:[%s5 + $0x2b4] sm:$0xf]
        %v923 = vld [vmem:[%s5 + $0x2b8] sm:$0xf]
        %v924 = vld [vmem:[%s5 + $0x2bc] sm:$0xf]
        %v925 = vld [vmem:[%s5 + $0x2c0] sm:$0xf]
        %v926 = vld [vmem:[%s5 + $0x2c4] sm:$0xf]
        %v927 = vld [vmem:[%s5 + $0x2c8] sm:$0xf]
        %v928 = vld [vmem:[%s5 + $0x2cc] sm:$0xf]
        %v929 = vld [vmem:[%s5 + $0x2d0] sm:$0xf]
        %v930 = vld [vmem:[%s5 + $0x2d4] sm:$0xf]
        %v931 = vld [vmem:[%s5 + $0x2d8] sm:$0xf]
        %v932 = vld [vmem:[%s5 + $0x2dc] sm:$0xf]
        %v933 = vld [vmem:[%s5 + $0x2e0] sm:$0xf]
        %v934 = vld [vmem:[%s5 + $0x2e4] sm:$0xf]
        %v935 = vld [vmem:[%s5 + $0x2e8] sm:$0xf]
        %v936 = vld [vmem:[%s5 + $0x2ec] sm:$0xf]
        %v937 = vld [vmem:[%s5 + $0x2f0] sm:$0xf]
        %v938 = vld [vmem:[%s5 + $0x2f4] sm:$0xf]
        %v939 = vld [vmem:[%s5 + $0x2f8] sm:$0xf]
        %v940 = vld [vmem:[%s5 + $0x2fc] sm:$0xf]
        %v941 = vld [vmem:[%s5 + $0x300] sm:$0xf]
        %v942 = vld [vmem:[%s5 + $0x304] sm:$0xf]
        %v943 = vld [vmem:[%s5 + $0x308] sm:$0xf]
        %v944 = vld [vmem:[%s5 + $0x30c] sm:$0xf]
        %v945 = vld [vmem:[%s5 + $0x310] sm:$0xf]
        %v946 = vld [vmem:[%s5 + $0x314] sm:$0xf]
        %v947 = vld [vmem:[%s5 + $0x318] sm:$0xf]
        %v948 = vld [vmem:[%s5 + $0x31c] sm:$0xf]
        %v949 = vld [vmem:[%s5 + $0x320] sm:$0xf]
        %v950 = vld [vmem:[%s5 + $0x324] sm:$0xf]
        %v951 = vld [vmem:[%s5 + $0x328] sm:$0xf]
        %v952 = vld [vmem:[%s5 + $0x32c] sm:$0xf]
        %v953 = vld [vmem:[%s5 + $0x330] sm:$0xf]
        %v954 = vld [vmem:[%s5 + $0x334] sm:$0xf]
        %v955 = vld [vmem:[%s5 + $0x338] sm:$0xf]
        %v956 = vld [vmem:[%s5 + $0x33c] sm:$0xf]
        %v957 = vld [vmem:[%s5 + $0x340] sm:$0xf]
        %v958 = vld [vmem:[%s5 + $0x344] sm:$0xf]
        %v959 = vld [vmem:[%s5 + $0x348] sm:$0xf]
        %v960 = vld [vmem:[%s5 + $0x34c] sm:$0xf]
        %v961 = vld [vmem:[%s5 + $0x350] sm:$0xf]
        %v962 = vld [vmem:[%s5 + $0x354] sm:$0xf]
        %v963 = vld [vmem:[%s5 + $0x358] sm:$0xf]
        %v964 = vld [vmem:[%s5 + $0x35c] sm:$0xf]
        %v965 = vld [vmem:[%s5 + $0x360] sm:$0xf]
        %v966 = vld [vmem:[%s5 + $0x364] sm:$0xf]
        %v967 = vld [vmem:[%s5 + $0x368] sm:$0xf]
        %v968 = vld [vmem:[%s5 + $0x36c] sm:$0xf]
        %v969 = vld [vmem:[%s5 + $0x370] sm:$0xf]
        %v970 = vld [vmem:[%s5 + $0x374] sm:$0xf]
        %v971 = vld [vmem:[%s5 + $0x378] sm:$0xf]
        %v972 = vld [vmem:[%s5 + $0x37c] sm:$0xf]
        %v973 = vld [vmem:[%s5 + $0x380] sm:$0xf]
        %v974 = vld [vmem:[%s5 + $0x384] sm:$0xf]
        %v975 = vld [vmem:[%s5 + $0x388] sm:$0xf]
        %v976 = vld [vmem:[%s5 + $0x38c] sm:$0xf]
        %v977 = vld [vmem:[%s5 + $0x390] sm:$0xf]
        %v978 = vld [vmem:[%s5 + $0x394] sm:$0xf]
        %v979 = vld [vmem:[%s5 + $0x398] sm:$0xf]
        %v980 = vld [vmem:[%s5 + $0x39c] sm:$0xf]
        %v981 = vld [vmem:[%s5 + $0x3a0] sm:$0xf]
        %v982 = vld [vmem:[%s5 + $0x3a4] sm:$0xf]
        %v983 = vld [vmem:[%s5 + $0x3a8] sm:$0xf]
        %v984 = vld [vmem:[%s5 + $0x3ac] sm:$0xf]
        %v985 = vld [vmem:[%s5 + $0x3b0] sm:$0xf]
        %v986 = vld [vmem:[%s5 + $0x3b4] sm:$0xf]
        %v987 = vld [vmem:[%s5 + $0x3b8] sm:$0xf]
        %v988 = vld [vmem:[%s5 + $0x3bc] sm:$0xf]
        %v989 = vld [vmem:[%s5 + $0x3c0] sm:$0xf]
        %v990 = vld [vmem:[%s5 + $0x3c4] sm:$0xf]
        %v991 = vld [vmem:[%s5 + $0x3c8] sm:$0xf]
        %v992 = vld [vmem:[%s5 + $0x3cc] sm:$0xf]
        %v993 = vld [vmem:[%s5 + $0x3d0] sm:$0xf]
        %v994 = vld [vmem:[%s5 + $0x3d4] sm:$0xf]
        %v995 = vld [vmem:[%s5 + $0x3d8] sm:$0xf]
        %v996 = vld [vmem:[%s5 + $0x3dc] sm:$0xf]
        %v997 = vld [vmem:[%s5 + $0x3e0] sm:$0xf]
        %v998 = vld [vmem:[%s5 + $0x3e4] sm:$0xf]
        %v999 = vld [vmem:[%s5 + $0x3e8] sm:$0xf]
        %v1000 = vld [vmem:[%s5 + $0x3ec] sm:$0xf]
        %v1001 = vld [vmem:[%s5 + $0x3f0] sm:$0xf]
        %v1002 = vld [vmem:[%s5 + $0x3f4] sm:$0xf]
        %v1003 = vld [vmem:[%s5 + $0x3f8] sm:$0xf]
        %v1004 = vld [vmem:[%s5 + $0x3fc] sm:$0xf]
        %v1005 = vld [vmem:[%s6] sm:$0x1]
        %v1262 = vunpack.c.l.b16 %v749
        %v1263 = vunpack.c.l.b16 %v750
        %v1264 = vunpack.c.l.b16 %v751
        %v1265 = vunpack.c.l.b16 %v752
        %v1266 = vunpack.c.l.b16 %v753
        %v1267 = vunpack.c.l.b16 %v754
        %v1268 = vunpack.c.l.b16 %v755
        %v1269 = vunpack.c.l.b16 %v756
        %v1270 = vunpack.c.l.b16 %v757
        %v1271 = vunpack.c.l.b16 %v758
        %v1272 = vunpack.c.l.b16 %v759
        %v1273 = vunpack.c.l.b16 %v760
        %v1274 = vunpack.c.l.b16 %v761
        %v1275 = vunpack.c.l.b16 %v762
        %v1276 = vunpack.c.l.b16 %v763
        %v1277 = vunpack.c.l.b16 %v764
        %v1278 = vunpack.c.l.b16 %v765
        %v1279 = vunpack.c.l.b16 %v766
        %v1280 = vunpack.c.l.b16 %v767
        %v1281 = vunpack.c.l.b16 %v768
        %v1282 = vunpack.c.l.b16 %v769
        %v1283 = vunpack.c.l.b16 %v770
        %v1284 = vunpack.c.l.b16 %v771
        %v1285 = vunpack.c.l.b16 %v772
        %v1286 = vunpack.c.l.b16 %v773
        %v1287 = vunpack.c.l.b16 %v774
        %v1288 = vunpack.c.l.b16 %v775
        %v1289 = vunpack.c.l.b16 %v776
        %v1290 = vunpack.c.l.b16 %v777
        %v1291 = vunpack.c.l.b16 %v778
        %v1292 = vunpack.c.l.b16 %v779
        %v1293 = vunpack.c.l.b16 %v780
        %v1294 = vunpack.c.l.b16 %v781
        %v1295 = vunpack.c.l.b16 %v782
        %v1296 = vunpack.c.l.b16 %v783
        %v1297 = vunpack.c.l.b16 %v784
        %v1298 = vunpack.c.l.b16 %v785
        %v1299 = vunpack.c.l.b16 %v786
        %v1300 = vunpack.c.l.b16 %v787
        %v1301 = vunpack.c.l.b16 %v788
        %v1302 = vunpack.c.l.b16 %v789
        %v1303 = vunpack.c.l.b16 %v790
        %v1304 = vunpack.c.l.b16 %v791
        %v1305 = vunpack.c.l.b16 %v792
        %v1306 = vunpack.c.l.b16 %v793
        %v1307 = vunpack.c.l.b16 %v794
        %v1308 = vunpack.c.l.b16 %v795
        %v1309 = vunpack.c.l.b16 %v796
        %v1310 = vunpack.c.l.b16 %v797
        %v1311 = vunpack.c.l.b16 %v798
        %v1312 = vunpack.c.l.b16 %v799
        %v1313 = vunpack.c.l.b16 %v800
        %v1314 = vunpack.c.l.b16 %v801
        %v1315 = vunpack.c.l.b16 %v802
        %v1316 = vunpack.c.l.b16 %v803
        %v1317 = vunpack.c.l.b16 %v804
        %v1318 = vunpack.c.l.b16 %v805
        %v1319 = vunpack.c.l.b16 %v806
        %v1320 = vunpack.c.l.b16 %v807
        %v1321 = vunpack.c.l.b16 %v808
        %v1322 = vunpack.c.l.b16 %v809
        %v1323 = vunpack.c.l.b16 %v810
        %v1324 = vunpack.c.l.b16 %v811
        %v1325 = vunpack.c.l.b16 %v812
        %v1326 = vunpack.c.l.b16 %v813
        %v1327 = vunpack.c.l.b16 %v814
        %v1328 = vunpack.c.l.b16 %v815
        %v1329 = vunpack.c.l.b16 %v816
        %v1330 = vunpack.c.l.b16 %v817
        %v1331 = vunpack.c.l.b16 %v818
        %v1332 = vunpack.c.l.b16 %v819
        %v1333 = vunpack.c.l.b16 %v820
        %v1334 = vunpack.c.l.b16 %v821
        %v1335 = vunpack.c.l.b16 %v822
        %v1336 = vunpack.c.l.b16 %v823
        %v1337 = vunpack.c.l.b16 %v824
        %v1338 = vunpack.c.l.b16 %v825
        %v1339 = vunpack.c.l.b16 %v826
        %v1340 = vunpack.c.l.b16 %v827
        %v1341 = vunpack.c.l.b16 %v828
        %v1342 = vunpack.c.l.b16 %v829
        %v1343 = vunpack.c.l.b16 %v830
        %v1344 = vunpack.c.l.b16 %v831
        %v1345 = vunpack.c.l.b16 %v832
        %v1346 = vunpack.c.l.b16 %v833
        %v1347 = vunpack.c.l.b16 %v834
        %v1348 = vunpack.c.l.b16 %v835
        %v1349 = vunpack.c.l.b16 %v836
        %v1350 = vunpack.c.l.b16 %v837
        %v1351 = vunpack.c.l.b16 %v838
        %v1352 = vunpack.c.l.b16 %v839
        %v1353 = vunpack.c.l.b16 %v840
        %v1354 = vunpack.c.l.b16 %v841
        %v1355 = vunpack.c.l.b16 %v842
        %v1356 = vunpack.c.l.b16 %v843
        %v1357 = vunpack.c.l.b16 %v844
        %v1358 = vunpack.c.l.b16 %v845
        %v1359 = vunpack.c.l.b16 %v846
        %v1360 = vunpack.c.l.b16 %v847
        %v1361 = vunpack.c.l.b16 %v848
        %v1362 = vunpack.c.l.b16 %v849
        %v1363 = vunpack.c.l.b16 %v850
        %v1364 = vunpack.c.l.b16 %v851
        %v1365 = vunpack.c.l.b16 %v852
        %v1366 = vunpack.c.l.b16 %v853
        %v1367 = vunpack.c.l.b16 %v854
        %v1368 = vunpack.c.l.b16 %v855
        %v1369 = vunpack.c.l.b16 %v856
        %v1370 = vunpack.c.l.b16 %v857
        %v1371 = vunpack.c.l.b16 %v858
        %v1372 = vunpack.c.l.b16 %v859
        %v1373 = vunpack.c.l.b16 %v860
        %v1374 = vunpack.c.l.b16 %v861
        %v1375 = vunpack.c.l.b16 %v862
        %v1376 = vunpack.c.l.b16 %v863
        %v1377 = vunpack.c.l.b16 %v864
        %v1378 = vunpack.c.l.b16 %v865
        %v1379 = vunpack.c.l.b16 %v866
        %v1380 = vunpack.c.l.b16 %v867
        %v1381 = vunpack.c.l.b16 %v868
        %v1382 = vunpack.c.l.b16 %v869
        %v1383 = vunpack.c.l.b16 %v870
        %v1384 = vunpack.c.l.b16 %v871
        %v1385 = vunpack.c.l.b16 %v872
        %v1386 = vunpack.c.l.b16 %v873
        %v1387 = vunpack.c.l.b16 %v874
        %v1388 = vunpack.c.l.b16 %v875
        %v1389 = vunpack.c.l.b16 %v876
        %v1390 = vunpack.c.l.b16 %v877
        %v1391 = vunpack.c.l.b16 %v878
        %v1392 = vunpack.c.l.b16 %v879
        %v1393 = vunpack.c.l.b16 %v880
        %v1394 = vunpack.c.l.b16 %v881
        %v1395 = vunpack.c.l.b16 %v882
        %v1396 = vunpack.c.l.b16 %v883
        %v1397 = vunpack.c.l.b16 %v884
        %v1398 = vunpack.c.l.b16 %v885
        %v1399 = vunpack.c.l.b16 %v886
        %v1400 = vunpack.c.l.b16 %v887
        %v1401 = vunpack.c.l.b16 %v888
        %v1402 = vunpack.c.l.b16 %v889
        %v1403 = vunpack.c.l.b16 %v890
        %v1404 = vunpack.c.l.b16 %v891
        %v1405 = vunpack.c.l.b16 %v892
        %v1406 = vunpack.c.l.b16 %v893
        %v1407 = vunpack.c.l.b16 %v894
        %v1408 = vunpack.c.l.b16 %v895
        %v1409 = vunpack.c.l.b16 %v896
        %v1410 = vunpack.c.l.b16 %v897
        %v1411 = vunpack.c.l.b16 %v898
        %v1412 = vunpack.c.l.b16 %v899
        %v1413 = vunpack.c.l.b16 %v900
        %v1414 = vunpack.c.l.b16 %v901
        %v1415 = vunpack.c.l.b16 %v902
        %v1416 = vunpack.c.l.b16 %v903
        %v1417 = vunpack.c.l.b16 %v904
        %v1418 = vunpack.c.l.b16 %v905
        %v1419 = vunpack.c.l.b16 %v906
        %v1420 = vunpack.c.l.b16 %v907
        %v1421 = vunpack.c.l.b16 %v908
        %v1422 = vunpack.c.l.b16 %v909
        %v1423 = vunpack.c.l.b16 %v910
        %v1424 = vunpack.c.l.b16 %v911
        %v1425 = vunpack.c.l.b16 %v912
        %v1426 = vunpack.c.l.b16 %v913
        %v1427 = vunpack.c.l.b16 %v914
        %v1428 = vunpack.c.l.b16 %v915
        %v1429 = vunpack.c.l.b16 %v916
        %v1430 = vunpack.c.l.b16 %v917
        %v1431 = vunpack.c.l.b16 %v918
        %v1432 = vunpack.c.l.b16 %v919
        %v1433 = vunpack.c.l.b16 %v920
        %v1434 = vunpack.c.l.b16 %v921
        %v1435 = vunpack.c.l.b16 %v922
        %v1436 = vunpack.c.l.b16 %v923
        %v1437 = vunpack.c.l.b16 %v924
        %v1438 = vunpack.c.l.b16 %v925
        %v1439 = vunpack.c.l.b16 %v926
        %v1440 = vunpack.c.l.b16 %v927
        %v1441 = vunpack.c.l.b16 %v928
        %v1442 = vunpack.c.l.b16 %v929
        %v1443 = vunpack.c.l.b16 %v930
        %v1444 = vunpack.c.l.b16 %v931
        %v1445 = vunpack.c.l.b16 %v932
        %v1446 = vunpack.c.l.b16 %v933
        %v1447 = vunpack.c.l.b16 %v934
        %v1448 = vunpack.c.l.b16 %v935
        %v1449 = vunpack.c.l.b16 %v936
        %v1450 = vunpack.c.l.b16 %v937
        %v1451 = vunpack.c.l.b16 %v938
        %v1452 = vunpack.c.l.b16 %v939
        %v1453 = vunpack.c.l.b16 %v940
        %v1454 = vunpack.c.l.b16 %v941
        %v1455 = vunpack.c.l.b16 %v942
        %v1456 = vunpack.c.l.b16 %v943
        %v1457 = vunpack.c.l.b16 %v944
        %v1458 = vunpack.c.l.b16 %v945
        %v1459 = vunpack.c.l.b16 %v946
        %v1460 = vunpack.c.l.b16 %v947
        %v1461 = vunpack.c.l.b16 %v948
        %v1462 = vunpack.c.l.b16 %v949
        %v1463 = vunpack.c.l.b16 %v950
        %v1464 = vunpack.c.l.b16 %v951
        %v1465 = vunpack.c.l.b16 %v952
        %v1466 = vunpack.c.l.b16 %v953
        %v1467 = vunpack.c.l.b16 %v954
        %v1468 = vunpack.c.l.b16 %v955
        %v1469 = vunpack.c.l.b16 %v956
        %v1470 = vunpack.c.l.b16 %v957
        %v1471 = vunpack.c.l.b16 %v958
        %v1472 = vunpack.c.l.b16 %v959
        %v1473 = vunpack.c.l.b16 %v960
        %v1474 = vunpack.c.l.b16 %v961
        %v1475 = vunpack.c.l.b16 %v962
        %v1476 = vunpack.c.l.b16 %v963
        %v1477 = vunpack.c.l.b16 %v964
        %v1478 = vunpack.c.l.b16 %v965
        %v1479 = vunpack.c.l.b16 %v966
        %v1480 = vunpack.c.l.b16 %v967
        %v1481 = vunpack.c.l.b16 %v968
        %v1482 = vunpack.c.l.b16 %v969
        %v1483 = vunpack.c.l.b16 %v970
        %v1484 = vunpack.c.l.b16 %v971
        %v1485 = vunpack.c.l.b16 %v972
        %v1486 = vunpack.c.l.b16 %v973
        %v1487 = vunpack.c.l.b16 %v974
        %v1488 = vunpack.c.l.b16 %v975
        %v1489 = vunpack.c.l.b16 %v976
        %v1490 = vunpack.c.l.b16 %v977
        %v1491 = vunpack.c.l.b16 %v978
        %v1492 = vunpack.c.l.b16 %v979
        %v1493 = vunpack.c.l.b16 %v980
        %v1494 = vunpack.c.l.b16 %v981
        %v1495 = vunpack.c.l.b16 %v982
        %v1496 = vunpack.c.l.b16 %v983
        %v1497 = vunpack.c.l.b16 %v984
        %v1498 = vunpack.c.l.b16 %v985
        %v1499 = vunpack.c.l.b16 %v986
        %v1500 = vunpack.c.l.b16 %v987
        %v1501 = vunpack.c.l.b16 %v988
        %v1502 = vunpack.c.l.b16 %v989
        %v1503 = vunpack.c.l.b16 %v990
        %v1504 = vunpack.c.l.b16 %v991
        %v1505 = vunpack.c.l.b16 %v992
        %v1506 = vunpack.c.l.b16 %v993
        %v1507 = vunpack.c.l.b16 %v994
        %v1508 = vunpack.c.l.b16 %v995
        %v1509 = vunpack.c.l.b16 %v996
        %v1510 = vunpack.c.l.b16 %v997
        %v1511 = vunpack.c.l.b16 %v998
        %v1512 = vunpack.c.l.b16 %v999
        %v1513 = vunpack.c.l.b16 %v1000
        %v1514 = vunpack.c.l.b16 %v1001
        %v1515 = vunpack.c.l.b16 %v1002
        %v1516 = vunpack.c.l.b16 %v1003
        %v1517 = vunpack.c.l.b16 %v1004
        %v1518 = vpack.c.b16 %v1263, %v1262
        %v1519 = vpack.c.b16 %v1265, %v1264
        %v1520 = vpack.c.b16 %v1267, %v1266
        %v1521 = vpack.c.b16 %v1269, %v1268
        %v1522 = vpack.c.b16 %v1271, %v1270
        %v1523 = vpack.c.b16 %v1273, %v1272
        %v1524 = vpack.c.b16 %v1275, %v1274
        %v1525 = vpack.c.b16 %v1277, %v1276
        %v1526 = vpack.c.b16 %v1279, %v1278
        %v1527 = vpack.c.b16 %v1281, %v1280
        %v1528 = vpack.c.b16 %v1283, %v1282
        %v1529 = vpack.c.b16 %v1285, %v1284
        %v1530 = vpack.c.b16 %v1287, %v1286
        %v1531 = vpack.c.b16 %v1289, %v1288
        %v1532 = vpack.c.b16 %v1291, %v1290
        %v1533 = vpack.c.b16 %v1293, %v1292
        %v1534 = vpack.c.b16 %v1295, %v1294
        %v1535 = vpack.c.b16 %v1297, %v1296
        %v1536 = vpack.c.b16 %v1299, %v1298
        %v1537 = vpack.c.b16 %v1301, %v1300
        %v1538 = vpack.c.b16 %v1303, %v1302
        %v1539 = vpack.c.b16 %v1305, %v1304
        %v1540 = vpack.c.b16 %v1307, %v1306
        %v1541 = vpack.c.b16 %v1309, %v1308
        %v1542 = vpack.c.b16 %v1311, %v1310
        %v1543 = vpack.c.b16 %v1313, %v1312
        %v1544 = vpack.c.b16 %v1315, %v1314
        %v1545 = vpack.c.b16 %v1317, %v1316
        %v1546 = vpack.c.b16 %v1319, %v1318
        %v1547 = vpack.c.b16 %v1321, %v1320
        %v1548 = vpack.c.b16 %v1323, %v1322
        %v1549 = vpack.c.b16 %v1325, %v1324
        %v1550 = vpack.c.b16 %v1327, %v1326
        %v1551 = vpack.c.b16 %v1329, %v1328
        %v1552 = vpack.c.b16 %v1331, %v1330
        %v1553 = vpack.c.b16 %v1333, %v1332
        %v1554 = vpack.c.b16 %v1335, %v1334
        %v1555 = vpack.c.b16 %v1337, %v1336
        %v1556 = vpack.c.b16 %v1339, %v1338
        %v1557 = vpack.c.b16 %v1341, %v1340
        %v1558 = vpack.c.b16 %v1343, %v1342
        %v1559 = vpack.c.b16 %v1345, %v1344
        %v1560 = vpack.c.b16 %v1347, %v1346
        %v1561 = vpack.c.b16 %v1349, %v1348
        %v1562 = vpack.c.b16 %v1351, %v1350
        %v1563 = vpack.c.b16 %v1353, %v1352
        %v1564 = vpack.c.b16 %v1355, %v1354
        %v1565 = vpack.c.b16 %v1357, %v1356
        %v1566 = vpack.c.b16 %v1359, %v1358
        %v1567 = vpack.c.b16 %v1361, %v1360
        %v1568 = vpack.c.b16 %v1363, %v1362
        %v1569 = vpack.c.b16 %v1365, %v1364
        %v1570 = vpack.c.b16 %v1367, %v1366
        %v1571 = vpack.c.b16 %v1369, %v1368
        %v1572 = vpack.c.b16 %v1371, %v1370
        %v1573 = vpack.c.b16 %v1373, %v1372
        %v1574 = vpack.c.b16 %v1375, %v1374
        %v1575 = vpack.c.b16 %v1377, %v1376
        %v1576 = vpack.c.b16 %v1379, %v1378
        %v1577 = vpack.c.b16 %v1381, %v1380
        %v1578 = vpack.c.b16 %v1383, %v1382
        %v1579 = vpack.c.b16 %v1385, %v1384
        %v1580 = vpack.c.b16 %v1387, %v1386
        %v1581 = vpack.c.b16 %v1389, %v1388
        %v1582 = vpack.c.b16 %v1391, %v1390
        %v1583 = vpack.c.b16 %v1393, %v1392
        %v1584 = vpack.c.b16 %v1395, %v1394
        %v1585 = vpack.c.b16 %v1397, %v1396
        %v1586 = vpack.c.b16 %v1399, %v1398
        %v1587 = vpack.c.b16 %v1401, %v1400
        %v1588 = vpack.c.b16 %v1403, %v1402
        %v1589 = vpack.c.b16 %v1405, %v1404
        %v1590 = vpack.c.b16 %v1407, %v1406
        %v1591 = vpack.c.b16 %v1409, %v1408
        %v1592 = vpack.c.b16 %v1411, %v1410
        %v1593 = vpack.c.b16 %v1413, %v1412
        %v1594 = vpack.c.b16 %v1415, %v1414
        %v1595 = vpack.c.b16 %v1417, %v1416
        %v1596 = vpack.c.b16 %v1419, %v1418
        %v1597 = vpack.c.b16 %v1421, %v1420
        %v1598 = vpack.c.b16 %v1423, %v1422
        %v1599 = vpack.c.b16 %v1425, %v1424
        %v1600 = vpack.c.b16 %v1427, %v1426
        %v1601 = vpack.c.b16 %v1429, %v1428
        %v1602 = vpack.c.b16 %v1431, %v1430
        %v1603 = vpack.c.b16 %v1433, %v1432
        %v1604 = vpack.c.b16 %v1435, %v1434
        %v1605 = vpack.c.b16 %v1437, %v1436
        %v1606 = vpack.c.b16 %v1439, %v1438
        %v1607 = vpack.c.b16 %v1441, %v1440
        %v1608 = vpack.c.b16 %v1443, %v1442
        %v1609 = vpack.c.b16 %v1445, %v1444
        %v1610 = vpack.c.b16 %v1447, %v1446
        %v1611 = vpack.c.b16 %v1449, %v1448
        %v1612 = vpack.c.b16 %v1451, %v1450
        %v1613 = vpack.c.b16 %v1453, %v1452
        %v1614 = vpack.c.b16 %v1455, %v1454
        %v1615 = vpack.c.b16 %v1457, %v1456
        %v1616 = vpack.c.b16 %v1459, %v1458
        %v1617 = vpack.c.b16 %v1461, %v1460
        %v1618 = vpack.c.b16 %v1463, %v1462
        %v1619 = vpack.c.b16 %v1465, %v1464
        %v1620 = vpack.c.b16 %v1467, %v1466
        %v1621 = vpack.c.b16 %v1469, %v1468
        %v1622 = vpack.c.b16 %v1471, %v1470
        %v1623 = vpack.c.b16 %v1473, %v1472
        %v1624 = vpack.c.b16 %v1475, %v1474
        %v1625 = vpack.c.b16 %v1477, %v1476
        %v1626 = vpack.c.b16 %v1479, %v1478
        %v1627 = vpack.c.b16 %v1481, %v1480
        %v1628 = vpack.c.b16 %v1483, %v1482
        %v1629 = vpack.c.b16 %v1485, %v1484
        %v1630 = vpack.c.b16 %v1487, %v1486
        %v1631 = vpack.c.b16 %v1489, %v1488
        %v1632 = vpack.c.b16 %v1491, %v1490
        %v1633 = vpack.c.b16 %v1493, %v1492
        %v1634 = vpack.c.b16 %v1495, %v1494
        %v1635 = vpack.c.b16 %v1497, %v1496
        %v1636 = vpack.c.b16 %v1499, %v1498
        %v1637 = vpack.c.b16 %v1501, %v1500
        %v1638 = vpack.c.b16 %v1503, %v1502
        %v1639 = vpack.c.b16 %v1505, %v1504
        %v1640 = vpack.c.b16 %v1507, %v1506
        %v1641 = vpack.c.b16 %v1509, %v1508
        %v1642 = vpack.c.b16 %v1511, %v1510
        %v1643 = vpack.c.b16 %v1513, %v1512
        %v1644 = vpack.c.b16 %v1515, %v1514
        %v1645 = vpack.c.b16 %v1517, %v1516
        %1774 = vmatprep.subr.bf16.mxu0 0
        %1775 = vmatpush1.bf16.msra.mxu0 %v1518
        %1776 = vmatprep.subr.bf16.mxu0 0
        %1777 = vmatpush1.bf16.msra.mxu0 %v1519
        %1778 = vmatprep.subr.bf16.mxu0 0
        %1779 = vmatpush1.bf16.msra.mxu0 %v1520
        %1780 = vmatprep.subr.bf16.mxu0 0
        %1781 = vmatpush1.bf16.msra.mxu0 %v1521
        %1782 = vmatprep.subr.bf16.mxu0 0
        %1783 = vmatpush1.bf16.msra.mxu0 %v1522
        %1784 = vmatprep.subr.bf16.mxu0 0
        %1785 = vmatpush1.bf16.msra.mxu0 %v1523
        %1786 = vmatprep.subr.bf16.mxu0 0
        %1787 = vmatpush1.bf16.msra.mxu0 %v1524
        %1788 = vmatprep.subr.bf16.mxu0 0
        %1789 = vmatpush1.bf16.msra.mxu0 %v1525
        %1790 = vmatprep.subr.bf16.mxu0 0
        %1791 = vmatpush1.bf16.msra.mxu0 %v1526
        %1792 = vmatprep.subr.bf16.mxu0 0
        %1793 = vmatpush1.bf16.msra.mxu0 %v1527
        %1794 = vmatprep.subr.bf16.mxu0 0
        %1795 = vmatpush1.bf16.msra.mxu0 %v1528
        %1796 = vmatprep.subr.bf16.mxu0 0
        %1797 = vmatpush1.bf16.msra.mxu0 %v1529
        %1798 = vmatprep.subr.bf16.mxu0 0
        %1799 = vmatpush1.bf16.msra.mxu0 %v1530
        %1800 = vmatprep.subr.bf16.mxu0 0
        %1801 = vmatpush1.bf16.msra.mxu0 %v1531
        %1802 = vmatprep.subr.bf16.mxu0 0
        %1803 = vmatpush1.bf16.msra.mxu0 %v1532
        %1804 = vmatprep.subr.bf16.mxu0 0
        %1805 = vmatpush1.bf16.msra.mxu0 %v1533
        %1806 = vmatprep.mubr.bf16.mxu0 %v734
        %1807 = vmatmul.mubr.bf16.gmra.mrb[0].mxu0 %v733
        %v1808 = vpop.f32.mrb[0].mxu0
        %v1809 = vadd.f32 %v1005, %v1808
        %v1810 = vpop.f32.mrb[0].mxu0
        %v1811 = vpop.f32.mrb[0].mxu0
        %v1812 = vpop.f32.mrb[0].mxu0
        %1813 = vdwg.mxu0
        %1814 = vmatprep.subr.bf16.mxu0 0
        %1815 = vmatpush1.bf16.msra.mxu0 %v1534
        %1816 = vmatprep.subr.bf16.mxu0 0
        %1817 = vmatpush1.bf16.msra.mxu0 %v1535
        %1818 = vmatprep.subr.bf16.mxu0 0
        %1819 = vmatpush1.bf16.msra.mxu0 %v1536
        %1820 = vmatprep.subr.bf16.mxu0 0
        %1821 = vmatpush1.bf16.msra.mxu0 %v1537
        %1822 = vmatprep.subr.bf16.mxu0 0
        %1823 = vmatpush1.bf16.msra.mxu0 %v1538
        %1824 = vmatprep.subr.bf16.mxu0 0
        %1825 = vmatpush1.bf16.msra.mxu0 %v1539
        %1826 = vmatprep.subr.bf16.mxu0 0
        %1827 = vmatpush1.bf16.msra.mxu0 %v1540
        %1828 = vmatprep.subr.bf16.mxu0 0
        %1829 = vmatpush1.bf16.msra.mxu0 %v1541
        %1830 = vmatprep.subr.bf16.mxu0 0
        %1831 = vmatpush1.bf16.msra.mxu0 %v1542
        %1832 = vmatprep.subr.bf16.mxu0 0
        %1833 = vmatpush1.bf16.msra.mxu0 %v1543
        %1834 = vmatprep.subr.bf16.mxu0 0
        %1835 = vmatpush1.bf16.msra.mxu0 %v1544
        %1836 = vmatprep.subr.bf16.mxu0 0
        %1837 = vmatpush1.bf16.msra.mxu0 %v1545
        %1838 = vmatprep.subr.bf16.mxu0 0
        %1839 = vmatpush1.bf16.msra.mxu0 %v1546
        %1840 = vmatprep.subr.bf16.mxu0 0
        %1841 = vmatpush1.bf16.msra.mxu0 %v1547
        %1842 = vmatprep.subr.bf16.mxu0 0
        %1843 = vmatpush1.bf16.msra.mxu0 %v1548
        %1844 = vmatprep.subr.bf16.mxu0 0
        %1845 = vmatpush1.bf16.msra.mxu0 %v1549
        %1846 = vmatprep.mubr.bf16.mxu0 %v736
        %1847 = vmatmul.mubr.bf16.gmra.mrb[0].mxu0 %v735
        %v1848 = vpop.f32.mrb[0].mxu0
        %v1849 = vadd.f32 %v1809, %v1848
        %v1850 = vpop.f32.mrb[0].mxu0
        %v1851 = vpop.f32.mrb[0].mxu0
        %v1852 = vpop.f32.mrb[0].mxu0
        %1853 = vdwg.mxu0
        %1854 = vmatprep.subr.bf16.mxu0 0
        %1855 = vmatpush1.bf16.msra.mxu0 %v1550
        %1856 = vmatprep.subr.bf16.mxu0 0
        %1857 = vmatpush1.bf16.msra.mxu0 %v1551
        %1858 = vmatprep.subr.bf16.mxu0 0
        %1859 = vmatpush1.bf16.msra.mxu0 %v1552
        %1860 = vmatprep.subr.bf16.mxu0 0
        %1861 = vmatpush1.bf16.msra.mxu0 %v1553
        %1862 = vmatprep.subr.bf16.mxu0 0
        %1863 = vmatpush1.bf16.msra.mxu0 %v1554
        %1864 = vmatprep.subr.bf16.mxu0 0
        %1865 = vmatpush1.bf16.msra.mxu0 %v1555
        %1866 = vmatprep.subr.bf16.mxu0 0
        %1867 = vmatpush1.bf16.msra.mxu0 %v1556
        %1868 = vmatprep.subr.bf16.mxu0 0
        %1869 = vmatpush1.bf16.msra.mxu0 %v1557
        %1870 = vmatprep.subr.bf16.mxu0 0
        %1871 = vmatpush1.bf16.msra.mxu0 %v1558
        %1872 = vmatprep.subr.bf16.mxu0 0
        %1873 = vmatpush1.bf16.msra.mxu0 %v1559
        %1874 = vmatprep.subr.bf16.mxu0 0
        %1875 = vmatpush1.bf16.msra.mxu0 %v1560
        %1876 = vmatprep.subr.bf16.mxu0 0
        %1877 = vmatpush1.bf16.msra.mxu0 %v1561
        %1878 = vmatprep.subr.bf16.mxu0 0
        %1879 = vmatpush1.bf16.msra.mxu0 %v1562
        %1880 = vmatprep.subr.bf16.mxu0 0
        %1881 = vmatpush1.bf16.msra.mxu0 %v1563
        %1882 = vmatprep.subr.bf16.mxu0 0
        %1883 = vmatpush1.bf16.msra.mxu0 %v1564
        %1884 = vmatprep.subr.bf16.mxu0 0
        %1885 = vmatpush1.bf16.msra.mxu0 %v1565
        %1886 = vmatprep.mubr.bf16.mxu0 %v738
        %1887 = vmatmul.mubr.bf16.gmra.mrb[0].mxu0 %v737
        %v1888 = vpop.f32.mrb[0].mxu0
        %v1889 = vadd.f32 %v1849, %v1888
        %v1890 = vpop.f32.mrb[0].mxu0
        %v1891 = vpop.f32.mrb[0].mxu0
        %v1892 = vpop.f32.mrb[0].mxu0
        %1893 = vdwg.mxu0
        %1894 = vmatprep.subr.bf16.mxu0 0
        %1895 = vmatpush1.bf16.msra.mxu0 %v1566
        %1896 = vmatprep.subr.bf16.mxu0 0
        %1897 = vmatpush1.bf16.msra.mxu0 %v1567
        %1898 = vmatprep.subr.bf16.mxu0 0
        %1899 = vmatpush1.bf16.msra.mxu0 %v1568
        %1900 = vmatprep.subr.bf16.mxu0 0
        %1901 = vmatpush1.bf16.msra.mxu0 %v1569
        %1902 = vmatprep.subr.bf16.mxu0 0
        %1903 = vmatpush1.bf16.msra.mxu0 %v1570
        %1904 = vmatprep.subr.bf16.mxu0 0
        %1905 = vmatpush1.bf16.msra.mxu0 %v1571
        %1906 = vmatprep.subr.bf16.mxu0 0
        %1907 = vmatpush1.bf16.msra.mxu0 %v1572
        %1908 = vmatprep.subr.bf16.mxu0 0
        %1909 = vmatpush1.bf16.msra.mxu0 %v1573
        %1910 = vmatprep.subr.bf16.mxu0 0
        %1911 = vmatpush1.bf16.msra.mxu0 %v1574
        %1912 = vmatprep.subr.bf16.mxu0 0
        %1913 = vmatpush1.bf16.msra.mxu0 %v1575
        %1914 = vmatprep.subr.bf16.mxu0 0
        %1915 = vmatpush1.bf16.msra.mxu0 %v1576
        %1916 = vmatprep.subr.bf16.mxu0 0
        %1917 = vmatpush1.bf16.msra.mxu0 %v1577
        %1918 = vmatprep.subr.bf16.mxu0 0
        %1919 = vmatpush1.bf16.msra.mxu0 %v1578
        %1920 = vmatprep.subr.bf16.mxu0 0
        %1921 = vmatpush1.bf16.msra.mxu0 %v1579
        %1922 = vmatprep.subr.bf16.mxu0 0
        %1923 = vmatpush1.bf16.msra.mxu0 %v1580
        %1924 = vmatprep.subr.bf16.mxu0 0
        %1925 = vmatpush1.bf16.msra.mxu0 %v1581
        %1926 = vmatprep.mubr.bf16.mxu0 %v740
        %1927 = vmatmul.mubr.bf16.gmra.mrb[0].mxu0 %v739
        %v1928 = vpop.f32.mrb[0].mxu0
        %v1929 = vadd.f32 %v1889, %v1928
        %v1930 = vpop.f32.mrb[0].mxu0
        %v1931 = vpop.f32.mrb[0].mxu0
        %v1932 = vpop.f32.mrb[0].mxu0
        %1933 = vdwg.mxu0
        %1934 = vmatprep.subr.bf16.mxu0 0
        %1935 = vmatpush1.bf16.msra.mxu0 %v1582
        %1936 = vmatprep.subr.bf16.mxu0 0
        %1937 = vmatpush1.bf16.msra.mxu0 %v1583
        %1938 = vmatprep.subr.bf16.mxu0 0
        %1939 = vmatpush1.bf16.msra.mxu0 %v1584
        %1940 = vmatprep.subr.bf16.mxu0 0
        %1941 = vmatpush1.bf16.msra.mxu0 %v1585
        %1942 = vmatprep.subr.bf16.mxu0 0
        %1943 = vmatpush1.bf16.msra.mxu0 %v1586
        %1944 = vmatprep.subr.bf16.mxu0 0
        %1945 = vmatpush1.bf16.msra.mxu0 %v1587
        %1946 = vmatprep.subr.bf16.mxu0 0
        %1947 = vmatpush1.bf16.msra.mxu0 %v1588
        %1948 = vmatprep.subr.bf16.mxu0 0
        %1949 = vmatpush1.bf16.msra.mxu0 %v1589
        %1950 = vmatprep.subr.bf16.mxu0 0
        %1951 = vmatpush1.bf16.msra.mxu0 %v1590
        %1952 = vmatprep.subr.bf16.mxu0 0
        %1953 = vmatpush1.bf16.msra.mxu0 %v1591
        %1954 = vmatprep.subr.bf16.mxu0 0
        %1955 = vmatpush1.bf16.msra.mxu0 %v1592
        %1956 = vmatprep.subr.bf16.mxu0 0
        %1957 = vmatpush1.bf16.msra.mxu0 %v1593
        %1958 = vmatprep.subr.bf16.mxu0 0
        %1959 = vmatpush1.bf16.msra.mxu0 %v1594
        %1960 = vmatprep.subr.bf16.mxu0 0
        %1961 = vmatpush1.bf16.msra.mxu0 %v1595
        %1962 = vmatprep.subr.bf16.mxu0 0
        %1963 = vmatpush1.bf16.msra.mxu0 %v1596
        %1964 = vmatprep.subr.bf16.mxu0 0
        %1965 = vmatpush1.bf16.msra.mxu0 %v1597
        %1966 = vmatprep.mubr.bf16.mxu0 %v742
        %1967 = vmatmul.mubr.bf16.gmra.mrb[0].mxu0 %v741
        %v1968 = vpop.f32.mrb[0].mxu0
        %v1969 = vadd.f32 %v1929, %v1968
        %v1970 = vpop.f32.mrb[0].mxu0
        %v1971 = vpop.f32.mrb[0].mxu0
        %v1972 = vpop.f32.mrb[0].mxu0
        %1973 = vdwg.mxu0
        %1974 = vmatprep.subr.bf16.mxu0 0
        %1975 = vmatpush1.bf16.msra.mxu0 %v1598
        %1976 = vmatprep.subr.bf16.mxu0 0
        %1977 = vmatpush1.bf16.msra.mxu0 %v1599
        %1978 = vmatprep.subr.bf16.mxu0 0
        %1979 = vmatpush1.bf16.msra.mxu0 %v1600
        %1980 = vmatprep.subr.bf16.mxu0 0
        %1981 = vmatpush1.bf16.msra.mxu0 %v1601
        %1982 = vmatprep.subr.bf16.mxu0 0
        %1983 = vmatpush1.bf16.msra.mxu0 %v1602
        %1984 = vmatprep.subr.bf16.mxu0 0
        %1985 = vmatpush1.bf16.msra.mxu0 %v1603
        %1986 = vmatprep.subr.bf16.mxu0 0
        %1987 = vmatpush1.bf16.msra.mxu0 %v1604
        %1988 = vmatprep.subr.bf16.mxu0 0
        %1989 = vmatpush1.bf16.msra.mxu0 %v1605
        %1990 = vmatprep.subr.bf16.mxu0 0
        %1991 = vmatpush1.bf16.msra.mxu0 %v1606
        %1992 = vmatprep.subr.bf16.mxu0 0
        %1993 = vmatpush1.bf16.msra.mxu0 %v1607
        %1994 = vmatprep.subr.bf16.mxu0 0
        %1995 = vmatpush1.bf16.msra.mxu0 %v1608
        %1996 = vmatprep.subr.bf16.mxu0 0
        %1997 = vmatpush1.bf16.msra.mxu0 %v1609
        %1998 = vmatprep.subr.bf16.mxu0 0
        %1999 = vmatpush1.bf16.msra.mxu0 %v1610
        %2000 = vmatprep.subr.bf16.mxu0 0
        %2001 = vmatpush1.bf16.msra.mxu0 %v1611
        %2002 = vmatprep.subr.bf16.mxu0 0
        %2003 = vmatpush1.bf16.msra.mxu0 %v1612
        %2004 = vmatprep.subr.bf16.mxu0 0
        %2005 = vmatpush1.bf16.msra.mxu0 %v1613
        %2006 = vmatprep.mubr.bf16.mxu0 %v744
        %2007 = vmatmul.mubr.bf16.gmra.mrb[0].mxu0 %v743
        %v2008 = vpop.f32.mrb[0].mxu0
        %v2009 = vadd.f32 %v1969, %v2008
        %v2010 = vpop.f32.mrb[0].mxu0
        %v2011 = vpop.f32.mrb[0].mxu0
        %v2012 = vpop.f32.mrb[0].mxu0
        %2013 = vdwg.mxu0
        %2014 = vmatprep.subr.bf16.mxu0 0
        %2015 = vmatpush1.bf16.msra.mxu0 %v1614
        %2016 = vmatprep.subr.bf16.mxu0 0
        %2017 = vmatpush1.bf16.msra.mxu0 %v1615
        %2018 = vmatprep.subr.bf16.mxu0 0
        %2019 = vmatpush1.bf16.msra.mxu0 %v1616
        %2020 = vmatprep.subr.bf16.mxu0 0
        %2021 = vmatpush1.bf16.msra.mxu0 %v1617
        %2022 = vmatprep.subr.bf16.mxu0 0
        %2023 = vmatpush1.bf16.msra.mxu0 %v1618
        %2024 = vmatprep.subr.bf16.mxu0 0
        %2025 = vmatpush1.bf16.msra.mxu0 %v1619
        %2026 = vmatprep.subr.bf16.mxu0 0
        %2027 = vmatpush1.bf16.msra.mxu0 %v1620
        %2028 = vmatprep.subr.bf16.mxu0 0
        %2029 = vmatpush1.bf16.msra.mxu0 %v1621
        %2030 = vmatprep.subr.bf16.mxu0 0
        %2031 = vmatpush1.bf16.msra.mxu0 %v1622
        %2032 = vmatprep.subr.bf16.mxu0 0
        %2033 = vmatpush1.bf16.msra.mxu0 %v1623
        %2034 = vmatprep.subr.bf16.mxu0 0
        %2035 = vmatpush1.bf16.msra.mxu0 %v1624
        %2036 = vmatprep.subr.bf16.mxu0 0
        %2037 = vmatpush1.bf16.msra.mxu0 %v1625
        %2038 = vmatprep.subr.bf16.mxu0 0
        %2039 = vmatpush1.bf16.msra.mxu0 %v1626
        %2040 = vmatprep.subr.bf16.mxu0 0
        %2041 = vmatpush1.bf16.msra.mxu0 %v1627
        %2042 = vmatprep.subr.bf16.mxu0 0
        %2043 = vmatpush1.bf16.msra.mxu0 %v1628
        %2044 = vmatprep.subr.bf16.mxu0 0
        %2045 = vmatpush1.bf16.msra.mxu0 %v1629
        %2046 = vmatprep.mubr.bf16.mxu0 %v746
        %2047 = vmatmul.mubr.bf16.gmra.mrb[0].mxu0 %v745
        %v2048 = vpop.f32.mrb[0].mxu0
        %v2049 = vadd.f32 %v2009, %v2048
        %v2050 = vpop.f32.mrb[0].mxu0
        %v2051 = vpop.f32.mrb[0].mxu0
        %v2052 = vpop.f32.mrb[0].mxu0
        %2053 = vdwg.mxu0
        %2054 = vmatprep.subr.bf16.mxu0 0
        %2055 = vmatpush1.bf16.msra.mxu0 %v1630
        %2056 = vmatprep.subr.bf16.mxu0 0
        %2057 = vmatpush1.bf16.msra.mxu0 %v1631
        %2058 = vmatprep.subr.bf16.mxu0 0
        %2059 = vmatpush1.bf16.msra.mxu0 %v1632
        %2060 = vmatprep.subr.bf16.mxu0 0
        %2061 = vmatpush1.bf16.msra.mxu0 %v1633
        %2062 = vmatprep.subr.bf16.mxu0 0
        %2063 = vmatpush1.bf16.msra.mxu0 %v1634
        %2064 = vmatprep.subr.bf16.mxu0 0
        %2065 = vmatpush1.bf16.msra.mxu0 %v1635
        %2066 = vmatprep.subr.bf16.mxu0 0
        %2067 = vmatpush1.bf16.msra.mxu0 %v1636
        %2068 = vmatprep.subr.bf16.mxu0 0
        %2069 = vmatpush1.bf16.msra.mxu0 %v1637
        %2070 = vmatprep.subr.bf16.mxu0 0
        %2071 = vmatpush1.bf16.msra.mxu0 %v1638
        %2072 = vmatprep.subr.bf16.mxu0 0
        %2073 = vmatpush1.bf16.msra.mxu0 %v1639
        %2074 = vmatprep.subr.bf16.mxu0 0
        %2075 = vmatpush1.bf16.msra.mxu0 %v1640
        %2076 = vmatprep.subr.bf16.mxu0 0
        %2077 = vmatpush1.bf16.msra.mxu0 %v1641
        %2078 = vmatprep.subr.bf16.mxu0 0
        %2079 = vmatpush1.bf16.msra.mxu0 %v1642
        %2080 = vmatprep.subr.bf16.mxu0 0
        %2081 = vmatpush1.bf16.msra.mxu0 %v1643
        %2082 = vmatprep.subr.bf16.mxu0 0
        %2083 = vmatpush1.bf16.msra.mxu0 %v1644
        %2084 = vmatprep.subr.bf16.mxu0 0
        %2085 = vmatpush1.bf16.msra.mxu0 %v1645
        %2086 = vmatprep.mubr.bf16.mxu0 %v748
        %2087 = vmatmul.mubr.bf16.gmra.mrb[0].mxu0 %v747
        %v2088 = vpop.f32.mrb[0].mxu0
        %v2089 = vadd.f32 %v2049, %v2088
        %v2090 = vpop.f32.mrb[0].mxu0
        %v2091 = vpop.f32.mrb[0].mxu0
        %v2092 = vpop.f32.mrb[0].mxu0
        %2093 = vdwg.mxu0
        %v2094 = vmax.f32 %v2089, 0.0
        %v2095 = vpack.c.bf16 %v2094, %v2094
        %v2096 = vld [vmem:[%s7] sm:$0xf]
        %v2097 = vld [vmem:[%s7 + $0x4] sm:$0xf]
        %v2098 = vld [vmem:[%s7 + $0x8] sm:$0xf]
        %v2099 = vld [vmem:[%s7 + $0xc] sm:$0xf]
        %v2100 = vld [vmem:[%s7 + $0x10] sm:$0xf]
        %v2101 = vld [vmem:[%s7 + $0x14] sm:$0xf]
        %v2102 = vld [vmem:[%s7 + $0x18] sm:$0xf]
        %v2103 = vld [vmem:[%s7 + $0x1c] sm:$0xf]
        %v2104 = vld [vmem:[%s7 + $0x20] sm:$0xf]
        %v2105 = vld [vmem:[%s7 + $0x24] sm:$0xf]
        %v2106 = vld [vmem:[%s7 + $0x28] sm:$0xf]
        %v2107 = vld [vmem:[%s7 + $0x2c] sm:$0xf]
        %v2108 = vld [vmem:[%s7 + $0x30] sm:$0xf]
        %v2109 = vld [vmem:[%s7 + $0x34] sm:$0xf]
        %v2110 = vld [vmem:[%s7 + $0x38] sm:$0xf]
        %v2111 = vld [vmem:[%s7 + $0x3c] sm:$0xf]
        %v2112 = vld [vmem:[%s8] sm:$0x1]
        %v2129 = vunpack.c.l.b16 %v2096
        %v2130 = vunpack.c.l.b16 %v2097
        %v2131 = vunpack.c.l.b16 %v2098
        %v2132 = vunpack.c.l.b16 %v2099
        %v2133 = vunpack.c.l.b16 %v2100
        %v2134 = vunpack.c.l.b16 %v2101
        %v2135 = vunpack.c.l.b16 %v2102
        %v2136 = vunpack.c.l.b16 %v2103
        %v2137 = vunpack.c.l.b16 %v2104
        %v2138 = vunpack.c.l.b16 %v2105
        %v2139 = vunpack.c.l.b16 %v2106
        %v2140 = vunpack.c.l.b16 %v2107
        %v2141 = vunpack.c.l.b16 %v2108
        %v2142 = vunpack.c.l.b16 %v2109
        %v2143 = vunpack.c.l.b16 %v2110
        %v2144 = vunpack.c.l.b16 %v2111
        %v2145 = vpack.c.b16 %v2130, %v2129
        %v2146 = vpack.c.b16 %v2132, %v2131
        %v2147 = vpack.c.b16 %v2134, %v2133
        %v2148 = vpack.c.b16 %v2136, %v2135
        %v2149 = vpack.c.b16 %v2138, %v2137
        %v2150 = vpack.c.b16 %v2140, %v2139
        %v2151 = vpack.c.b16 %v2142, %v2141
        %v2152 = vpack.c.b16 %v2144, %v2143
        %2161 = vmatprep.subr.bf16.mxu0 0
        %2162 = vmatpush1.bf16.msra.mxu0 %v2145
        %2163 = vmatprep.subr.bf16.mxu0 0
        %2164 = vmatpush1.bf16.msra.mxu0 %v2146
        %2165 = vmatprep.subr.bf16.mxu0 0
        %2166 = vmatpush1.bf16.msra.mxu0 %v2147
        %2167 = vmatprep.subr.bf16.mxu0 0
        %2168 = vmatpush1.bf16.msra.mxu0 %v2148
        %2169 = vmatprep.subr.bf16.mxu0 0
        %2170 = vmatpush1.bf16.msra.mxu0 %v2149
        %2171 = vmatprep.subr.bf16.mxu0 0
        %2172 = vmatpush1.bf16.msra.mxu0 %v2150
        %2173 = vmatprep.subr.bf16.mxu0 0
        %2174 = vmatpush1.bf16.msra.mxu0 %v2151
        %2175 = vmatprep.subr.bf16.mxu0 0
        %2176 = vmatpush1.bf16.msra.mxu0 %v2152
        %2177 = vmatprep.subr.bf16.mxu0 0
        %2178 = vmatpush1.bf16.msra.mxu0 0
        %2179 = vmatprep.subr.bf16.mxu0 0
        %2180 = vmatpush1.bf16.msra.mxu0 0
        %2181 = vmatprep.subr.bf16.mxu0 0
        %2182 = vmatpush1.bf16.msra.mxu0 0
        %2183 = vmatprep.subr.bf16.mxu0 0
        %2184 = vmatpush1.bf16.msra.mxu0 0
        %2185 = vmatprep.subr.bf16.mxu0 0
        %2186 = vmatpush1.bf16.msra.mxu0 0
        %2187 = vmatprep.subr.bf16.mxu0 0
        %2188 = vmatpush1.bf16.msra.mxu0 0
        %2189 = vmatprep.subr.bf16.mxu0 0
        %2190 = vmatpush1.bf16.msra.mxu0 0
        %2191 = vmatprep.subr.bf16.mxu0 0
        %2192 = vmatpush1.bf16.msra.mxu0 0
        %2193 = vmatprep.mubr.bf16.mxu0 0
        %2194 = vmatmul.mubr.bf16.gmra.mrb[0].mxu0 %v2095
        %v2195 = vpop.f32.mrb[0].mxu0
        %v2196 = vadd.f32 %v2112, %v2195
        %v2197 = vpop.f32.mrb[0].mxu0
        %v2198 = vpop.f32.mrb[0].mxu0
        %v2199 = vpop.f32.mrb[0].mxu0
        %2200 = vdwg.mxu0
        %2201 = vst [vmem:[%s324] sm:$0x1] %v2196
        %s2202 = sand.u32 %s225, 1
        %s2203 = scalar_lea.sflag [#allocation3], %s2202
        %s2204 = sand.u32 %s225, 1
        %s2205 = scalar_lea.vmem [#allocation2], %s2204
        // Predicated region
        $region57: #{weightnet_forward.1} parent=55 // pred_check
          %p2206 = pneg %p235
        $region58: #{weightnet_forward.1} parent=55 // pred_check_branch
          %2208 = sbr.rel (%p2206) target = $region60
        $region59: #{weightnet_forward.1} parent=55 // pred_region
          %s2210 = ssub.s32 16, 16
          %2211 = vsyncadd %s2203, %s2210
          %s2212 = smul.addr %s23, 16
          %s2213 = scalar_lea.hbm %s9, %s2212
          %s2215 = sshll.u32 %s2205, 4
          %s2216 = int_to_ptr.vmem [resolvable:$true] %s2215
          %2218 = dma.vmem_to_hbm [thread:$0]  %s2216, 16, %s2213, %s2203
        $region60: #{weightnet_forward.1} parent=55 // pred_fallthru
          _
      $region56: #{weightnet_forward.1} parent=5 // pred_fallthru
        _
      %p2219 = scmp.le.s32.totalorder 2, %s18
      // Predicated region
      $region61: #{weightnet_forward.1} parent=5 // pred_check
        %p2220 = pneg %p2219
      $region62: #{weightnet_forward.1} parent=5 // pred_check_branch
        %2222 = sbr.rel (%p2220) target = $region64
      $region63: #{weightnet_forward.1} parent=5 // pred_region
        %s2223 = ssub.s32 %s18, 2
        // Predicated region
        $region65: #{weightnet_forward.1} parent=63 // pred_check
          %p2224 = pneg %p241
        $region66: #{weightnet_forward.1} parent=63 // pred_check_branch
          %2226 = sbr.rel (%p2224) target = $region68
        $region67: #{weightnet_forward.1} parent=63 // pred_region
          %s2227 = sand.u32 %s226, 1
          %s2228 = scalar_lea.sflag [#allocation3], %s2227
          %s2229 = sand.u32 %s226, 1
          %s2230 = scalar_lea.vmem [#allocation2], %s2229
          %2231 = dma.done %s2228, 16
        $region68: #{weightnet_forward.1} parent=63 // pred_fallthru
          _
      $region64: #{weightnet_forward.1} parent=5 // pred_fallthru
        _
    $region6: #{weightnet_forward.1} parent=1 // loop_footer
      %s22 = sadd.s32 1, %s18
    $region7: #{weightnet_forward.1} parent=1 // loop_footer_branch
      %17 = sbr.rel target = $region3
    $region8: #{weightnet_forward.1} parent=1 // loop_exit
      _
    %2232 = vsyncpa [#allocation3], 1
    %s2233 = scalar_lea.sflag [#allocation3], 1
    %2234 = vsyncpa %s2233, 1

</llo_original>
